<compile_context>
chip_gen: v5e
topology: v5e:2x2
jax: 0.10.0
libtpu: 0.0.40
codegen_flags: <defaults>
</compile_context>

<pallas_src>
import functools
import math

import jax
import jax.numpy as jnp
from jax.experimental import pallas as pl
from jax.experimental.pallas import tpu as pltpu

COMPUTE_DTYPE = jnp.bfloat16          # MXU operand dtype (accumulation is always f32)


def _default_vmem_limit():
    """Generation-aware VMEM budget: ~70% of physical (v7x 64 MiB, v5e/v6e 128 MiB)."""
    try:
        cap = getattr(pltpu.get_tpu_info(), "vmem_capacity_bytes", None)
        if cap:
            return int(cap * 0.7)
    except Exception:
        pass
    return 48 * 1024 * 1024           # conservative fallback, safe on every generation


VMEM_LIMIT_BYTES = _default_vmem_limit()


# ---------------------------------------------------------------------------
# small helpers
# ---------------------------------------------------------------------------
def _rep_spec(arr):
    """Full-array block, same block at every grid step (weights / small operands)."""
    return pl.BlockSpec(arr.shape, lambda *_, nd=arr.ndim: (0,) * nd)


def _divisor_tile(n, candidates):
    for c in candidates:
        if n % c == 0:
            return c
    # TODO(synk): masked ragged tail instead of a whole-axis block for huge non-divisible T.
    return n


def _layer_norm(x, g_ref, b_ref, eps=1e-5):
    mu = jnp.mean(x, axis=-1, keepdims=True)
    var = jnp.mean(jnp.square(x - mu), axis=-1, keepdims=True)
    return (x - mu) * jax.lax.rsqrt(var + eps) * g_ref[...] + b_ref[...]


# ---------------------------------------------------------------------------
# kernel 1: patch embed (Conv3d stride==kernel as matmul) + fused QKV projection
# ---------------------------------------------------------------------------
def patch_embed_qkv_kernel(p_ref, tpe_ref, wp_ref, bias_ref,
                           wq_ref, bq_ref, wkv_ref, bkv_ref,
                           xq_ref, kv_ref):
    # p_ref: (1, TT, K) bf16 patch rows; wp_ref: (K, E) bf16; bias_ref: (1, E) f32 is the
    # conv bias + channel positional embedding folded; tpe_ref: (TT, 1) f32 time PE.
    x = jnp.dot(p_ref[0], wp_ref[...], preferred_element_type=jnp.float32)
    x = x + bias_ref[...] + tpe_ref[...]                             # (TT, E) f32
    xb = x.astype(wq_ref.dtype)
    # 1/sqrt(E) already folded into wq / bq in the wrapper.
    q = jnp.dot(xb, wq_ref[...], preferred_element_type=jnp.float32) + bq_ref[...]
    kv = jnp.dot(xb, wkv_ref[...], preferred_element_type=jnp.float32) + bkv_ref[...]
    E = x.shape[-1]
    xq_ref[0, :, :E] = x.astype(xq_ref.dtype)                        # residual / LN input
    xq_ref[0, :, E:] = q.astype(xq_ref.dtype)                        # pre-scaled query
    kv_ref[0] = kv.astype(kv_ref.dtype)                              # [K | V]


# ---------------------------------------------------------------------------
# kernel 2: flash-style encoder layer (num_heads=1, relu FFN, post-LN, eval dropout) + pool
# ---------------------------------------------------------------------------
def flash_encoder_pool_kernel(xq_ref, kv_ref,
                              wo_ref, bo_ref, g1_ref, b1_ref,
                              w1_ref, bf1_ref, w2_ref, bf2_ref,
                              g2_ref, b2_ref,
                              o_ref, m_sc, l_sc, acc_sc, *, seq_len):
    E = acc_sc.shape[-1]
    ki = pl.program_id(2)

    @pl.when(ki == 0)
    def _():
        m_sc[...] = jnp.full_like(m_sc, -jnp.inf)
        l_sc[...] = jnp.zeros_like(l_sc)
        acc_sc[...] = jnp.zeros_like(acc_sc)

    q = xq_ref[0, :, E:]                       # (tq, E)  bf16, scale pre-folded
    k = kv_ref[0, :, :E]                       # (tkv, E) bf16
    v = kv_ref[0, :, E:]                       # (tkv, E) bf16

    s = jax.lax.dot_general(q, k, (((1,), (1,)), ((), ())),
                            preferred_element_type=jnp.float32)      # (tq, tkv) f32
    m_new = jnp.maximum(m_sc[...], jnp.max(s, axis=-1, keepdims=True))
    alpha = jnp.exp(m_sc[...] - m_new)
    p = jnp.exp(s - m_new)
    l_sc[...] = alpha * l_sc[...] + jnp.sum(p, axis=-1, keepdims=True)
    acc_sc[...] = alpha * acc_sc[...] + jnp.dot(p.astype(kv_ref.dtype), v,
                                                preferred_element_type=jnp.float32)
    m_sc[...] = m_new

    @pl.when(ki == pl.num_programs(2) - 1)
    def _():
        wdt = wo_ref.dtype
        x = xq_ref[0, :, :E].astype(jnp.float32)                     # residual input
        ctx = acc_sc[...] * pl.reciprocal(l_sc[...], approx=True)    # EUP reciprocal
        attn = jnp.dot(ctx.astype(wdt), wo_ref[...],
                       preferred_element_type=jnp.float32) + bo_ref[...]
        y = _layer_norm(x + attn, g1_ref, b1_ref)
        h = jnp.dot(y.astype(wdt), w1_ref[...],
                    preferred_element_type=jnp.float32) + bf1_ref[...]
        h = jnp.maximum(h, 0.0)                                      # relu
        h = jnp.dot(h.astype(wdt), w2_ref[...],
                    preferred_element_type=jnp.float32) + bf2_ref[...]
        z = _layer_norm(y + h, g2_ref, b2_ref)
        # partial mean pool for this q-tile (wrapper sums the per-tile partials)
        o_ref[0, 0] = (jnp.sum(z, axis=0, keepdims=True) * (1.0 / seq_len)).astype(o_ref.dtype)


# ---------------------------------------------------------------------------
# kernel 3: orientation MLP + aggregate encoder layer (sequence == batch axis) + head
# ---------------------------------------------------------------------------
def _encoder_layer_2d(x, wqkv_ref, bqkv_ref, wo_ref, bo_ref,
                      g1_ref, b1_ref, w1_ref, bf1_ref, w2_ref, bf2_ref,
                      g2_ref, b2_ref):
    """Post-LN nn.TransformerEncoderLayer on a tiny 2-D (S, E) sequence (exact softmax)."""
    E = g1_ref.shape[-1]
    wdt = wqkv_ref.dtype
    qkv = jnp.dot(x.astype(wdt), wqkv_ref[...],
                  preferred_element_type=jnp.float32) + bqkv_ref[...]
    q, k, v = qkv[:, :E], qkv[:, E:2 * E], qkv[:, 2 * E:]            # scale folded into Wq
    s = jax.lax.dot_general(q, k, (((1,), (1,)), ((), ())),
                            preferred_element_type=jnp.float32)
    s = s - jnp.max(s, axis=-1, keepdims=True)
    p = jnp.exp(s)
    p = p / jnp.sum(p, axis=-1, keepdims=True)                       # exact (S is tiny)
    ctx = jnp.dot(p, v, preferred_element_type=jnp.float32)
    attn = jnp.dot(ctx.astype(wdt), wo_ref[...],
                   preferred_element_type=jnp.float32) + bo_ref[...]
    x = _layer_norm(x + attn, g1_ref, b1_ref)
    h = jnp.dot(x.astype(wdt), w1_ref[...],
                preferred_element_type=jnp.float32) + bf1_ref[...]
    h = jnp.maximum(h, 0.0)
    h = jnp.dot(h.astype(wdt), w2_ref[...],
                preferred_element_type=jnp.float32) + bf2_ref[...]
    return _layer_norm(x + h, g2_ref, b2_ref)


def aggregate_kernel(sound_ref, phi_ref, ori_ref,
                     wm1_ref, bm1_ref, wm2_ref, bm2_ref, wm3_ref, bm3_ref,
                     wqkv_ref, bqkv_ref, wo_ref, bo_ref,
                     g1_ref, b1_ref, w1_ref, bf1_ref, w2_ref, bf2_ref,
                     g2_ref, b2_ref, wh_ref, bh_ref, out_ref):
    # orientation MLP: Linear(2, E/4) -> ReLU -> Linear(E/4, E/2) -> ReLU -> Linear(E/2, E)
    h = jnp.dot(ori_ref[...], wm1_ref[...], preferred_element_type=jnp.float32) + bm1_ref[...]
    h = jnp.maximum(h, 0.0)
    h = jnp.dot(h, wm2_ref[...], preferred_element_type=jnp.float32) + bm2_ref[...]
    h = jnp.maximum(h, 0.0)
    ori = jnp.dot(h, wm3_ref[...], preferred_element_type=jnp.float32) + bm3_ref[...]

    # aggregated = sound_pooled + phi_pooled.expand(B, -1) + orientation_mlp(orientation)
    x = sound_ref[...] + phi_ref[...] + ori                          # (B, E)

    # PyTorch treats the 2-D (B, E) input as an unbatched sequence: attention across batch.
    x = _encoder_layer_2d(x, wqkv_ref, bqkv_ref, wo_ref, bo_ref,
                          g1_ref, b1_ref, w1_ref, bf1_ref, w2_ref, bf2_ref,
                          g2_ref, b2_ref)

    # TODO(synk): if num_coordinates grows, keep this output lane-dense (pad toward 128).
    out = jnp.dot(x, wh_ref[...], preferred_element_type=jnp.float32) + bh_ref[...]
    out_ref[...] = out.astype(out_ref.dtype)


# ---------------------------------------------------------------------------
# weight re-layout (wrapper-side, constant per call)
# ---------------------------------------------------------------------------
def _split_qkv_args(tr, dtype=COMPUTE_DTYPE):
    """(Wq*scale, bq*scale) and packed (Wkv, bkv) for the patch-embed/flash path."""
    E = tr['in_proj_w'].shape[1]
    scale = 1.0 / math.sqrt(E)
    wqkv = tr['in_proj_w'].T                                   # (E, 3E) = [Wq.T|Wk.T|Wv.T]
    bqkv = tr['in_proj_b']
    wq = (wqkv[:, :E] * scale).astype(dtype)
    bq = (bqkv[:E] * scale).reshape(1, E).astype(jnp.float32)
    wkv = wqkv[:, E:].astype(dtype)
    bkv = bqkv[E:].reshape(1, 2 * E).astype(jnp.float32)
    return wq, bq, wkv, bkv


def _fused_qkv_args(tr, dtype=COMPUTE_DTYPE):
    """Fused (E, 3E) QKV weight with the attention scale folded into the Q third."""
    E = tr['in_proj_w'].shape[1]
    scale = 1.0 / math.sqrt(E)
    wqkv = tr['in_proj_w'].T
    wqkv = jnp.concatenate([wqkv[:, :E] * scale, wqkv[:, E:]], axis=1).astype(dtype)
    bqkv = tr['in_proj_b']
    bqkv = jnp.concatenate([bqkv[:E] * scale, bqkv[E:]]).reshape(1, 3 * E)
    return wqkv, bqkv


def _tail_args(tr, dtype=COMPUTE_DTYPE):
    """out_proj, norm1, FFN, norm2 parameters (the per-row tail of an encoder layer)."""
    E = tr['out_proj_w'].shape[0]
    return [
        tr['out_proj_w'].T.astype(dtype), tr['out_proj_b'].reshape(1, E),
        tr['norm1_w'].reshape(1, E), tr['norm1_b'].reshape(1, E),
        tr['linear1_w'].T.astype(dtype), tr['linear1_b'].reshape(1, -1),
        tr['linear2_w'].T.astype(dtype), tr['linear2_b'].reshape(1, E),
        tr['norm2_w'].reshape(1, E), tr['norm2_b'].reshape(1, E),
    ]


# ---------------------------------------------------------------------------
# wrappers
# ---------------------------------------------------------------------------
def _extract_patches(x, kd=3, kh=3, kw=2):
    """Non-overlapping Conv3d patch extraction (B, C, D, H, W) -> (B, T, K) in bf16.

    Conv output width is 1 (W == kw) and gets squeezed; token order is (d', h').  Done in
    bf16 to halve the transpose traffic.
    TODO(synk): fuse this transpose into the patch-embed kernel's HBM->VMEM DMA.
    """
    B, C, D, H, W = x.shape
    assert D % kd == 0 and H % kh == 0 and W == kw
    Dp, Hp = D // kd, H // kh
    p = x.astype(COMPUTE_DTYPE).reshape(B, C, Dp, kd, Hp, kh * kw)
    p = p.transpose(0, 2, 4, 1, 3, 5)                          # (B, Dp, Hp, C, kd, kh*kw)
    return p.reshape(B, Dp * Hp, C * kd * kh * kw)             # (B, T, K)


def _patch_embed_qkv(patches, proj, tr):
    """Patch projection + positional embeddings + fused QKV projection in one kernel."""
    B, T, K = patches.shape
    E = proj['proj_w'].shape[0]

    wp = proj['proj_w'].reshape(E, -1).T.astype(COMPUTE_DTYPE)          # (K, E)
    bias = (proj['proj_b'] + proj['channel_pe'][0, :, 0]).reshape(1, E)  # conv bias + channel PE
    tpe = proj['time_pe'][0, 0, :T].reshape(T, 1)                        # per-time-row scalar
    wq, bq, wkv, bkv = _split_qkv_args(tr)

    TT = _divisor_tile(T, (1024, 512, 256, 128))
    xq, kv = pl.pallas_call(
        patch_embed_qkv_kernel,
        out_shape=(jax.ShapeDtypeStruct((B, T, 2 * E), COMPUTE_DTYPE),   # [x | q]
                   jax.ShapeDtypeStruct((B, T, 2 * E), COMPUTE_DTYPE)),  # [k | v]
        grid=(B, T // TT),
        in_specs=[
            pl.BlockSpec((1, TT, K), lambda b, t: (b, t, 0)),
            pl.BlockSpec((TT, 1), lambda b, t: (t, 0)),
            _rep_spec(wp), _rep_spec(bias),
            _rep_spec(wq), _rep_spec(bq), _rep_spec(wkv), _rep_spec(bkv),
        ],
        out_specs=(pl.BlockSpec((1, TT, 2 * E), lambda b, t: (b, t, 0)),
                   pl.BlockSpec((1, TT, 2 * E), lambda b, t: (b, t, 0))),
        compiler_params=pltpu.CompilerParams(
            dimension_semantics=("parallel", "parallel"),
            vmem_limit_bytes=VMEM_LIMIT_BYTES),
    )(patches, tpe, wp, bias, wq, bq, wkv, bkv)
    return xq, kv


def _flash_encoder_pool(xq, kv, tr):
    """Flash-style encoder layer + mean pool.  Grid (B, q-tiles, kv-tiles)."""
    B, T, E2 = xq.shape
    E = E2 // 2
    tail = _tail_args(tr)

    tq = _divisor_tile(T, (512, 256, 128))
    tkv = _divisor_tile(T, (512, 256, 128))
    n_q, n_kv = T // tq, T // tkv

    kernel = functools.partial(flash_encoder_pool_kernel, seq_len=T)
    out = pl.pallas_call(
        kernel,
        out_shape=jax.ShapeDtypeStruct((B, n_q, 1, E), jnp.float32),
        grid=(B, n_q, n_kv),
        in_specs=[pl.BlockSpec((1, tq, 2 * E), lambda b, qi, ki: (b, qi, 0)),
                  pl.BlockSpec((1, tkv, 2 * E), lambda b, qi, ki: (b, ki, 0))]
                 + [_rep_spec(w) for w in tail],
        out_specs=pl.BlockSpec((1, 1, 1, E), lambda b, qi, ki: (b, qi, 0, 0)),
        scratch_shapes=[pltpu.VMEM((tq, 1), jnp.float32),       # m
                        pltpu.VMEM((tq, 1), jnp.float32),       # l
                        pltpu.VMEM((tq, E), jnp.float32)],      # acc
        compiler_params=pltpu.CompilerParams(
            dimension_semantics=("parallel", "parallel", "arbitrary"),
            vmem_limit_bytes=VMEM_LIMIT_BYTES),
    )(xq, kv, *tail)
    # per-q-tile partial means -> full mean over the sequence (tiny wrapper reduction)
    return out.reshape(B, n_q, E).sum(axis=1)                   # (B, E)


def _encode_branch(x, proj, tr):
    patches = _extract_patches(x)                               # (B, T, K) bf16
    xq, kv = _patch_embed_qkv(patches, proj, tr)
    return _flash_encoder_pool(xq, kv, tr)                      # (B, E)


def _aggregate(pooled_sound, pooled_phi, orientation, mlp, agg_tr, head):
    B, E = pooled_sound.shape
    NC = head['w'].shape[0]
    mlp_args = [
        mlp['w1'].T, mlp['b1'].reshape(1, -1),
        mlp['w2'].T, mlp['b2'].reshape(1, -1),
        mlp['w3'].T, mlp['b3'].reshape(1, -1),
    ]
    wqkv, bqkv = _fused_qkv_args(agg_tr)
    layer_args = [wqkv, bqkv] + _tail_args(agg_tr)
    head_args = [head['w'].T, head['b'].reshape(1, NC)]
    inputs = [pooled_sound, pooled_phi, orientation, *mlp_args, *layer_args, *head_args]

    return pl.pallas_call(
        aggregate_kernel,
        out_shape=jax.ShapeDtypeStruct((B, NC), jnp.float32),
        grid=(1,),
        in_specs=[_rep_spec(a) for a in inputs],
        out_specs=pl.BlockSpec((B, NC), lambda i: (0, 0)),
        compiler_params=pltpu.CompilerParams(
            dimension_semantics=("arbitrary",),
            vmem_limit_bytes=VMEM_LIMIT_BYTES),
    )(*inputs)


def orientation_aggregate_transformer_forward(sound, phi, orientation, params):
    # --- sound branch: PatchEmbed -> flash encoder layer -> mean pool ---
    pooled_s = _encode_branch(sound, params['sound_proj'], params['sound_tr'])     # (B, E)
    # --- modulation (phi) branch ---
    pooled_p = _encode_branch(phi, params['mod_proj'], params['mod_tr'])           # (B_phi, E)
    assert pooled_p.shape[0] in (1, pooled_s.shape[0])          # phi.expand(sound.shape[0], -1)
    # --- orientation MLP + aggregate transformer + output head (one fused kernel) ---
    return _aggregate(pooled_s, pooled_p, orientation,
                      params['ori_mlp'], params['agg_tr'], params['head'])


# ---------------------------------------------------------------------------
# deterministic parameter init (PyTorch parameter shapes)
# ---------------------------------------------------------------------------
def init_params(key, *, hidden_dim=128, num_coordinates=1, max_length=4096):
    E = hidden_dim
    keys = iter(jax.random.split(key, 64))

    def w(shape, scale=0.05):
        return scale * jax.random.normal(next(keys), shape, jnp.float32)

    def patch_embed_params(C):
        return dict(
            proj_w=w((E, C, 3, 3, 2)),                 # Conv3d weight
            proj_b=w((E,)),                            # Conv3d bias
            channel_pe=w((1, E, 1), 1.0),
            time_pe=w((1, 1, max_length), 1.0),
        )

    def encoder_layer_params():
        return dict(
            in_proj_w=w((3 * E, E)),                   # MultiheadAttention in-proj
            in_proj_b=w((3 * E,)),
            out_proj_w=w((E, E)),
            out_proj_b=w((E,)),
            linear1_w=w((E, E)),                       # dim_feedforward == hidden_dim
            linear1_b=jnp.zeros((E,), jnp.float32),
            linear2_w=w((E, E)),
            linear2_b=jnp.zeros((E,), jnp.float32),
            norm1_w=jnp.ones((E,), jnp.float32),
            norm1_b=jnp.zeros((E,), jnp.float32),
            norm2_w=jnp.ones((E,), jnp.float32),
            norm2_b=jnp.zeros((E,), jnp.float32),
        )

    return dict(
        sound_proj=patch_embed_params(8),
        sound_tr=encoder_layer_params(),
        mod_proj=patch_embed_params(4),
        mod_tr=encoder_layer_params(),
        ori_mlp=dict(
            w1=w((E // 4, 2)), b1=w((E // 4,)),
            w2=w((E // 2, E // 4)), b2=w((E // 2,)),
            w3=w((E, E // 2)), b3=w((E,)),
        ),
        agg_tr=encoder_layer_params(),
        head=dict(w=w((num_coordinates, E)),
                  b=jnp.zeros((num_coordinates,), jnp.float32)),
    )


if __name__ == "__main__":
    E = 128            # hidden_dim (lane-dense on TPU)
    NC = 1             # num_coordinates
    B = 2

    # Conv3d kernel/stride (3,3,2) => inputs (B, C, D, H, 2) with D%3==0, H%3==0,
    # sequence length T = (D//3)*(H//3).
    sound_shape = (B, 8, 48, 24, 2)     # -> 128 sound tokens / batch, K = 144
    phi_shape = (1, 4, 12, 24, 2)       # -> 32 modulation tokens, K = 72 (batch broadcast)
    ori_shape = (B, 2)

    key = jax.random.PRNGKey(0)
    k_sound, k_phi, k_ori, k_params = jax.random.split(key, 4)
    sound = jax.random.normal(k_sound, sound_shape, jnp.float32)
    phi = jax.random.normal(k_phi, phi_shape, jnp.float32)
    orientation = jax.random.normal(k_ori, ori_shape, jnp.float32)

    params = init_params(k_params, hidden_dim=E, num_coordinates=NC)

    out = orientation_aggregate_transformer_forward(sound, phi, orientation, params)
    out = jax.block_until_ready(out)
    assert out.shape == (B, NC), out.shape
    assert bool(jnp.all(jnp.isfinite(out)))
    print("KERNEL_OK")
</pallas_src>

<mosaic_0001>
module attributes {stable_mosaic.version = 11 : i64} {
  func.func @patch_embed_qkv_kernel(%arg0: i32, %arg1: i32, %arg2: memref<1x128x144xbf16, #tpu.memory_space<vmem>>, %arg3: memref<128x1xf32, #tpu.memory_space<vmem>>, %arg4: memref<144x128xbf16, #tpu.memory_space<vmem>>, %arg5: memref<1x128xf32, #tpu.memory_space<vmem>>, %arg6: memref<128x128xbf16, #tpu.memory_space<vmem>>, %arg7: memref<1x128xf32, #tpu.memory_space<vmem>>, %arg8: memref<128x256xbf16, #tpu.memory_space<vmem>>, %arg9: memref<1x256xf32, #tpu.memory_space<vmem>>, %arg10: memref<1x128x256xbf16, #tpu.memory_space<vmem>>, %arg11: memref<1x128x256xbf16, #tpu.memory_space<vmem>>) attributes {dimension_semantics = [#tpu.dimension_semantics<parallel>, #tpu.dimension_semantics<parallel>], iteration_bounds = array<i64: 2, 1>, scalar_prefetch = 0 : i64, scratch_operands = 0 : i64, tpu.core_type = #tpu.core_type<tc>, window_params = [{transform_indices = @transform_0, window_bounds = array<i64: 1, 128, 144>}, {transform_indices = @transform_1, window_bounds = array<i64: 128, 1>}, {pipeline_mode = #tpu.pipeline_mode<synchronous>, transform_indices = @transform_2, window_bounds = array<i64: 144, 128>}, {pipeline_mode = #tpu.pipeline_mode<synchronous>, transform_indices = @transform_3, window_bounds = array<i64: 1, 128>}, {pipeline_mode = #tpu.pipeline_mode<synchronous>, transform_indices = @transform_4, window_bounds = array<i64: 128, 128>}, {pipeline_mode = #tpu.pipeline_mode<synchronous>, transform_indices = @transform_5, window_bounds = array<i64: 1, 128>}, {pipeline_mode = #tpu.pipeline_mode<synchronous>, transform_indices = @transform_6, window_bounds = array<i64: 128, 256>}, {pipeline_mode = #tpu.pipeline_mode<synchronous>, transform_indices = @transform_7, window_bounds = array<i64: 1, 256>}, {transform_indices = @transform_8, window_bounds = array<i64: 1, 128, 256>}, {transform_indices = @transform_9, window_bounds = array<i64: 1, 128, 256>}]} {
    %c0 = arith.constant 0 : index
    %c0_0 = arith.constant 0 : index
    %c0_1 = arith.constant 0 : index
    %0 = vector.load %arg2[%c0, %c0_0, %c0_1] : memref<1x128x144xbf16, #tpu.memory_space<vmem>>, vector<1x128x144xbf16>
    %1 = vector.shape_cast %0 : vector<1x128x144xbf16> to vector<128x144xbf16>
    %c0_2 = arith.constant 0 : index
    %c0_3 = arith.constant 0 : index
    %2 = vector.load %arg4[%c0_2, %c0_3] : memref<144x128xbf16, #tpu.memory_space<vmem>>, vector<144x128xbf16>
    %cst = arith.constant dense<0.000000e+00> : vector<128x128xf32>
    %3 = tpu.matmul %1, %2, %cst {dimension_numbers = #tpu.dot_dimension_numbers<[1], [0], [0], [1], [0, 0, 1, 1], [], []>} : vector<128x144xbf16>, vector<144x128xbf16>, vector<128x128xf32> -> vector<128x128xf32>
    %c0_4 = arith.constant 0 : index
    %c0_5 = arith.constant 0 : index
    %4 = vector.load %arg5[%c0_4, %c0_5] : memref<1x128xf32, #tpu.memory_space<vmem>>, vector<1x128xf32>
    %5 = vector.broadcast %4 : vector<1x128xf32> to vector<128x128xf32>
    %6 = arith.addf %3, %5 : vector<128x128xf32>
    %c0_6 = arith.constant 0 : index
    %c0_7 = arith.constant 0 : index
    %7 = vector.load %arg3[%c0_6, %c0_7] : memref<128x1xf32, #tpu.memory_space<vmem>>, vector<128x1xf32>
    %8 = vector.broadcast %7 : vector<128x1xf32> to vector<128x128xf32>
    %9 = arith.addf %6, %8 : vector<128x128xf32>
    %10 = arith.truncf %9 : vector<128x128xf32> to vector<128x128xbf16>
    %c0_8 = arith.constant 0 : index
    %c0_9 = arith.constant 0 : index
    %11 = vector.load %arg6[%c0_8, %c0_9] : memref<128x128xbf16, #tpu.memory_space<vmem>>, vector<128x128xbf16>
    %cst_10 = arith.constant dense<0.000000e+00> : vector<128x128xf32>
    %12 = tpu.matmul %10, %11, %cst_10 {dimension_numbers = #tpu.dot_dimension_numbers<[1], [0], [0], [1], [0, 0, 1, 1], [], []>} : vector<128x128xbf16>, vector<128x128xbf16>, vector<128x128xf32> -> vector<128x128xf32>
    %c0_11 = arith.constant 0 : index
    %c0_12 = arith.constant 0 : index
    %13 = vector.load %arg7[%c0_11, %c0_12] : memref<1x128xf32, #tpu.memory_space<vmem>>, vector<1x128xf32>
    %14 = vector.broadcast %13 : vector<1x128xf32> to vector<128x128xf32>
    %15 = arith.addf %12, %14 : vector<128x128xf32>
    %c0_13 = arith.constant 0 : index
    %c0_14 = arith.constant 0 : index
    %16 = vector.load %arg8[%c0_13, %c0_14] : memref<128x256xbf16, #tpu.memory_space<vmem>>, vector<128x256xbf16>
    %cst_15 = arith.constant dense<0.000000e+00> : vector<128x256xf32>
    %17 = tpu.matmul %10, %16, %cst_15 {dimension_numbers = #tpu.dot_dimension_numbers<[1], [0], [0], [1], [0, 0, 1, 1], [], []>} : vector<128x128xbf16>, vector<128x256xbf16>, vector<128x256xf32> -> vector<128x256xf32>
    %c0_16 = arith.constant 0 : index
    %c0_17 = arith.constant 0 : index
    %18 = vector.load %arg9[%c0_16, %c0_17] : memref<1x256xf32, #tpu.memory_space<vmem>>, vector<1x256xf32>
    %19 = vector.broadcast %18 : vector<1x256xf32> to vector<128x256xf32>
    %20 = arith.addf %17, %19 : vector<128x256xf32>
    %21 = arith.truncf %9 : vector<128x128xf32> to vector<128x128xbf16>
    %c0_18 = arith.constant 0 : index
    %c0_19 = arith.constant 0 : index
    %c0_20 = arith.constant 0 : index
    %22 = vector.load %arg10[%c0_18, %c0_19, %c0_20] : memref<1x128x256xbf16, #tpu.memory_space<vmem>>, vector<1x128x128xbf16>
    %23 = vector.shape_cast %22 : vector<1x128x128xbf16> to vector<128x128xbf16>
    %24 = vector.shape_cast %21 : vector<128x128xbf16> to vector<1x128x128xbf16>
    tpu.vector_store %arg10[%c0_18, %c0_19, %c0_20], %24 {strides = array<i32>} : memref<1x128x256xbf16, #tpu.memory_space<vmem>>, vector<1x128x128xbf16>,
    %25 = arith.truncf %15 : vector<128x128xf32> to vector<128x128xbf16>
    %c0_21 = arith.constant 0 : index
    %c0_22 = arith.constant 0 : index
    %c128 = arith.constant 128 : index
    %26 = vector.load %arg10[%c0_21, %c0_22, %c128] : memref<1x128x256xbf16, #tpu.memory_space<vmem>>, vector<1x128x128xbf16>
    %27 = vector.shape_cast %26 : vector<1x128x128xbf16> to vector<128x128xbf16>
    %28 = vector.shape_cast %25 : vector<128x128xbf16> to vector<1x128x128xbf16>
    tpu.vector_store %arg10[%c0_21, %c0_22, %c128], %28 {strides = array<i32>} : memref<1x128x256xbf16, #tpu.memory_space<vmem>>, vector<1x128x128xbf16>,
    %29 = arith.truncf %20 : vector<128x256xf32> to vector<128x256xbf16>
    %c0_23 = arith.constant 0 : index
    %c0_24 = arith.constant 0 : index
    %c0_25 = arith.constant 0 : index
    %30 = vector.load %arg11[%c0_23, %c0_24, %c0_25] : memref<1x128x256xbf16, #tpu.memory_space<vmem>>, vector<1x128x256xbf16>
    %31 = vector.shape_cast %30 : vector<1x128x256xbf16> to vector<128x256xbf16>
    %32 = vector.shape_cast %29 : vector<128x256xbf16> to vector<1x128x256xbf16>
    tpu.vector_store %arg11[%c0_23, %c0_24, %c0_25], %32 {strides = array<i32>} : memref<1x128x256xbf16, #tpu.memory_space<vmem>>, vector<1x128x256xbf16>,
    return
  }
  func.func @transform_0(%arg0: i32, %arg1: i32) -> (i32, i32, i32) {
    %c0_i32 = arith.constant 0 : i32
    %c0_i32_0 = arith.constant 0 : i32
    return %arg0, %arg1, %c0_i32 : i32, i32, i32
  }
  func.func @transform_1(%arg0: i32, %arg1: i32) -> (i32, i32) {
    %c0_i32 = arith.constant 0 : i32
    %c0_i32_0 = arith.constant 0 : i32
    return %arg1, %c0_i32 : i32, i32
  }
  func.func @transform_2(%arg0: i32, %arg1: i32) -> (i32, i32) {
    %c0_i32 = arith.constant 0 : i32
    %c0_i32_0 = arith.constant 0 : i32
    %c0_i32_1 = arith.constant 0 : i32
    return %c0_i32, %c0_i32_0 : i32, i32
  }
  func.func @transform_3(%arg0: i32, %arg1: i32) -> (i32, i32) {
    %c0_i32 = arith.constant 0 : i32
    %c0_i32_0 = arith.constant 0 : i32
    %c0_i32_1 = arith.constant 0 : i32
    return %c0_i32, %c0_i32_0 : i32, i32
  }
  func.func @transform_4(%arg0: i32, %arg1: i32) -> (i32, i32) {
    %c0_i32 = arith.constant 0 : i32
    %c0_i32_0 = arith.constant 0 : i32
    %c0_i32_1 = arith.constant 0 : i32
    return %c0_i32, %c0_i32_0 : i32, i32
  }
  func.func @transform_5(%arg0: i32, %arg1: i32) -> (i32, i32) {
    %c0_i32 = arith.constant 0 : i32
    %c0_i32_0 = arith.constant 0 : i32
    %c0_i32_1 = arith.constant 0 : i32
    return %c0_i32, %c0_i32_0 : i32, i32
  }
  func.func @transform_6(%arg0: i32, %arg1: i32) -> (i32, i32) {
    %c0_i32 = arith.constant 0 : i32
    %c0_i32_0 = arith.constant 0 : i32
    %c0_i32_1 = arith.constant 0 : i32
    return %c0_i32, %c0_i32_0 : i32, i32
  }
  func.func @transform_7(%arg0: i32, %arg1: i32) -> (i32, i32) {
    %c0_i32 = arith.constant 0 : i32
    %c0_i32_0 = arith.constant 0 : i32
    %c0_i32_1 = arith.constant 0 : i32
    return %c0_i32, %c0_i32_0 : i32, i32
  }
  func.func @transform_8(%arg0: i32, %arg1: i32) -> (i32, i32, i32) {
    %c0_i32 = arith.constant 0 : i32
    %c0_i32_0 = arith.constant 0 : i32
    return %arg0, %arg1, %c0_i32 : i32, i32, i32
  }
  func.func @transform_9(%arg0: i32, %arg1: i32) -> (i32, i32, i32) {
    %c0_i32 = arith.constant 0 : i32
    %c0_i32_0 = arith.constant 0 : i32
    return %arg0, %arg1, %c0_i32 : i32, i32, i32
  }
}

</mosaic_0001>

<llo_original>
// kernel: tpu_custom_call.1
$region0: #{tpu_custom_call.1}
  #allocation0 [shape = 'u32[]', space=smem, size = 0x4, offset = 0x4, fixed_abs, tag = 'smem constant byte address 0x4 - core index']
  #allocation1 [shape = 'u32[72,128]{1,0:T(1,128)}', space=vmem, size = 0x9000, scoped, tag = 'internal scratch']
  %s0 = inlined_call_operand.vmem [shape: bf16[2,128,144], index: 0, kind: input, shape index: {}]
  %s1 = inlined_call_operand.vmem [shape: f32[128,1], index: 1, kind: input, shape index: {}]
  %s2 = inlined_call_operand.vmem [shape: bf16[144,128], index: 2, kind: input, shape index: {}]
  %s3 = inlined_call_operand.vmem [shape: f32[1,128], index: 3, kind: input, shape index: {}]
  %s4 = inlined_call_operand.vmem [shape: bf16[128,128], index: 4, kind: input, shape index: {}]
  %s5 = inlined_call_operand.vmem [shape: f32[1,128], index: 5, kind: input, shape index: {}]
  %s6 = inlined_call_operand.vmem [shape: bf16[128,256], index: 6, kind: input, shape index: {}]
  %s7 = inlined_call_operand.vmem [shape: f32[1,256], index: 7, kind: input, shape index: {}]
  %s8 = inlined_call_operand.hbm [shape: bf16[2,128,256], index: 8, kind: output, shape index: {0}]
  %s9 = inlined_call_operand.hbm [shape: bf16[2,128,256], index: 9, kind: output, shape index: {1}]
  %10 = xla_tuple %s8, %s9
  %s11 = sld [smem:[#allocation0]]
  $region73: #{tpu_custom_call.1} parent=0
    _
  %s13 = ssub.s32 1, %s11
  %s14 = scalar_select 0, %s13, %s11
  $region1: #{tpu_custom_call.1} parent=0
    #allocation2 [shape = 'u8[131072]{0}', space=vmem, size = 0x20000, scoped, tag = 'output window, operand 0']
    #allocation3 [shape = 's32[2]{0}', space=sflag, size = 0x8, scoped, tag = 'scoped memory for tpu_custom_call.1']
    #allocation4 [shape = 'u8[131072]{0}', space=vmem, size = 0x20000, scoped, tag = 'output window, operand 1']
    #allocation5 [shape = 's32[2]{0}', space=sflag, size = 0x8, scoped, tag = 'scoped memory for tpu_custom_call.1']
    %15 = vsyncpa [#allocation3], 0
    %s16 = scalar_lea.sflag [#allocation3], 1
    %17 = vsyncpa %s16, 0
    %18 = vsyncpa [#allocation5], 0
    %s19 = scalar_lea.sflag [#allocation5], 1
    %20 = vsyncpa %s19, 0
    loop: start=0, step=1, limit=4
    $region2: #{tpu_custom_call.1} parent=1 // loop_pre_header
      _
    $region3: #{tpu_custom_call.1} parent=1 // loop_header
      %s22 = sphi 0, %s26
      %p23 = scmp.ge.s32.totalorder %s22, 4
      %s29 = sphi 0, %s41
      %s30 = sphi 0, %s37
      %s31 = sphi 0, %s29
      %s32 = sphi 0, %s30
      %s33 = sphi 0, %s31
      %s34 = sphi 0, %s32
      %s46 = sphi 0, %s48
      %s49 = sphi 0, %s46
      %s50 = sphi 0, %s49
      %s66 = sphi 0, %s50
      %s72 = sphi 0, %s74
      %s75 = sphi 0, %s72
      %s76 = sphi 0, %s75
      %s92 = sphi 0, %s76
      %s96 = sphi 0, %s96
      %s98 = sphi 0, %s96
      %s99 = sphi 0, %s98
      %s113 = sphi 0, %s99
      %s117 = sphi 0, %s117
      %s119 = sphi 0, %s117
      %s120 = sphi 0, %s119
      %s134 = sphi 0, %s120
      %s138 = sphi 0, %s138
      %s140 = sphi 0, %s138
      %s141 = sphi 0, %s140
      %s155 = sphi 0, %s141
      %s159 = sphi 0, %s159
      %s161 = sphi 0, %s159
      %s162 = sphi 0, %s161
      %s176 = sphi 0, %s162
      %s180 = sphi 0, %s180
      %s182 = sphi 0, %s180
      %s183 = sphi 0, %s182
      %s197 = sphi 0, %s183
      %s201 = sphi 0, %s201
      %s203 = sphi 0, %s201
      %s204 = sphi 0, %s203
      %s218 = sphi 0, %s204
      %s226 = sphi 0, %s228
      %s229 = sphi 0, %s226
      %s230 = sphi 0, %s229
      %s246 = sphi 0, %s230
      %s254 = sphi 0, %s256
      %s257 = sphi 0, %s254
      %s258 = sphi 0, %s257
      %s274 = sphi 0, %s258
    $region4: #{tpu_custom_call.1} parent=1 // loop_header_branch
      %25 = sbr.rel (%p23) target = $region8
    $region5: #{tpu_custom_call.1} parent=1 // loop_body
      %s27 = ssub.s32 %s22, 1
      %s28 = ssub.s32 %s22, 2
      %s35 = sadd.s32 1, %s30
      %p36 = scmp.ge.s32.totalorder %s35, 1
      %s37 = scalar_select %p36, 0, %s35
      %s38 = sadd.s32 1, %s29
      %s39 = scalar_select %p36, %s38, %s29
      %p40 = scmp.ge.s32.totalorder %s39, 2
      %s41 = scalar_select %p40, 0, %s39
      %s42 = ssub.s32 %s29, %s41
      %s43 = ssub.s32 %s30, %s37
      %s44 = sor.u32 %s42, %s43
      %p45 = scmp.eq.s32.totalorder %s44, 0
      %s47 = sadd.s32 %s46, 1
      %s48 = scalar_select %p45, %s46, %s47
      %p51 = pneg %p45
      %p52 = scmp.eq.s32.totalorder %s22, 1
      %p53 = por %p51, %p52
      %p54 = scmp.ne.s32.totalorder %s46, %s49
      %p55 = scmp.eq.s32.totalorder %s22, 0
      %p56 = por %p54, %p55
      %p57 = scmp.ne.s32.totalorder %s46, %s49
      %p58 = scmp.eq.s32.totalorder %s27, 1
      %p59 = por %p57, %p58
      %p60 = scmp.ne.s32.totalorder %s49, %s50
      %p61 = scmp.eq.s32.totalorder %s27, 0
      %p62 = por %p60, %p61
      %p63 = scmp.ne.s32.totalorder %s49, %s50
      %p64 = scmp.eq.s32.totalorder %s28, 1
      %p65 = por %p63, %p64
      %p67 = scmp.ne.s32.totalorder %s50, %s66
      %p68 = scmp.eq.s32.totalorder %s28, 0
      %p69 = por %p67, %p68
      %s70 = ssub.s32 %s30, %s37
      %p71 = scmp.eq.s32.totalorder %s70, 0
      %s73 = sadd.s32 %s72, 1
      %s74 = scalar_select %p71, %s72, %s73
      %p77 = pneg %p71
      %p78 = scmp.eq.s32.totalorder %s22, 1
      %p79 = por %p77, %p78
      %p80 = scmp.ne.s32.totalorder %s72, %s75
      %p81 = scmp.eq.s32.totalorder %s22, 0
      %p82 = por %p80, %p81
      %p83 = scmp.ne.s32.totalorder %s72, %s75
      %p84 = scmp.eq.s32.totalorder %s27, 1
      %p85 = por %p83, %p84
      %p86 = scmp.ne.s32.totalorder %s75, %s76
      %p87 = scmp.eq.s32.totalorder %s27, 0
      %p88 = por %p86, %p87
      %p89 = scmp.ne.s32.totalorder %s75, %s76
      %p90 = scmp.eq.s32.totalorder %s28, 1
      %p91 = por %p89, %p90
      %p93 = scmp.ne.s32.totalorder %s76, %s92
      %p94 = scmp.eq.s32.totalorder %s28, 0
      %p95 = por %p93, %p94
      %s97 = sadd.s32 %s96, 1
      %p100 = scmp.eq.s32.totalorder %s22, 1
      %p101 = scmp.ne.s32.totalorder %s96, %s98
      %p102 = scmp.eq.s32.totalorder %s22, 0
      %p103 = por %p101, %p102
      %p104 = scmp.ne.s32.totalorder %s96, %s98
      %p105 = scmp.eq.s32.totalorder %s27, 1
      %p106 = por %p104, %p105
      %p107 = scmp.ne.s32.totalorder %s98, %s99
      %p108 = scmp.eq.s32.totalorder %s27, 0
      %p109 = por %p107, %p108
      %p110 = scmp.ne.s32.totalorder %s98, %s99
      %p111 = scmp.eq.s32.totalorder %s28, 1
      %p112 = por %p110, %p111
      %p114 = scmp.ne.s32.totalorder %s99, %s113
      %p115 = scmp.eq.s32.totalorder %s28, 0
      %p116 = por %p114, %p115
      %s118 = sadd.s32 %s117, 1
      %p121 = scmp.eq.s32.totalorder %s22, 1
      %p122 = scmp.ne.s32.totalorder %s117, %s119
      %p123 = scmp.eq.s32.totalorder %s22, 0
      %p124 = por %p122, %p123
      %p125 = scmp.ne.s32.totalorder %s117, %s119
      %p126 = scmp.eq.s32.totalorder %s27, 1
      %p127 = por %p125, %p126
      %p128 = scmp.ne.s32.totalorder %s119, %s120
      %p129 = scmp.eq.s32.totalorder %s27, 0
      %p130 = por %p128, %p129
      %p131 = scmp.ne.s32.totalorder %s119, %s120
      %p132 = scmp.eq.s32.totalorder %s28, 1
      %p133 = por %p131, %p132
      %p135 = scmp.ne.s32.totalorder %s120, %s134
      %p136 = scmp.eq.s32.totalorder %s28, 0
      %p137 = por %p135, %p136
      %s139 = sadd.s32 %s138, 1
      %p142 = scmp.eq.s32.totalorder %s22, 1
      %p143 = scmp.ne.s32.totalorder %s138, %s140
      %p144 = scmp.eq.s32.totalorder %s22, 0
      %p145 = por %p143, %p144
      %p146 = scmp.ne.s32.totalorder %s138, %s140
      %p147 = scmp.eq.s32.totalorder %s27, 1
      %p148 = por %p146, %p147
      %p149 = scmp.ne.s32.totalorder %s140, %s141
      %p150 = scmp.eq.s32.totalorder %s27, 0
      %p151 = por %p149, %p150
      %p152 = scmp.ne.s32.totalorder %s140, %s141
      %p153 = scmp.eq.s32.totalorder %s28, 1
      %p154 = por %p152, %p153
      %p156 = scmp.ne.s32.totalorder %s141, %s155
      %p157 = scmp.eq.s32.totalorder %s28, 0
      %p158 = por %p156, %p157
      %s160 = sadd.s32 %s159, 1
      %p163 = scmp.eq.s32.totalorder %s22, 1
      %p164 = scmp.ne.s32.totalorder %s159, %s161
      %p165 = scmp.eq.s32.totalorder %s22, 0
      %p166 = por %p164, %p165
      %p167 = scmp.ne.s32.totalorder %s159, %s161
      %p168 = scmp.eq.s32.totalorder %s27, 1
      %p169 = por %p167, %p168
      %p170 = scmp.ne.s32.totalorder %s161, %s162
      %p171 = scmp.eq.s32.totalorder %s27, 0
      %p172 = por %p170, %p171
      %p173 = scmp.ne.s32.totalorder %s161, %s162
      %p174 = scmp.eq.s32.totalorder %s28, 1
      %p175 = por %p173, %p174
      %p177 = scmp.ne.s32.totalorder %s162, %s176
      %p178 = scmp.eq.s32.totalorder %s28, 0
      %p179 = por %p177, %p178
      %s181 = sadd.s32 %s180, 1
      %p184 = scmp.eq.s32.totalorder %s22, 1
      %p185 = scmp.ne.s32.totalorder %s180, %s182
      %p186 = scmp.eq.s32.totalorder %s22, 0
      %p187 = por %p185, %p186
      %p188 = scmp.ne.s32.totalorder %s180, %s182
      %p189 = scmp.eq.s32.totalorder %s27, 1
      %p190 = por %p188, %p189
      %p191 = scmp.ne.s32.totalorder %s182, %s183
      %p192 = scmp.eq.s32.totalorder %s27, 0
      %p193 = por %p191, %p192
      %p194 = scmp.ne.s32.totalorder %s182, %s183
      %p195 = scmp.eq.s32.totalorder %s28, 1
      %p196 = por %p194, %p195
      %p198 = scmp.ne.s32.totalorder %s183, %s197
      %p199 = scmp.eq.s32.totalorder %s28, 0
      %p200 = por %p198, %p199
      %s202 = sadd.s32 %s201, 1
      %p205 = scmp.eq.s32.totalorder %s22, 1
      %p206 = scmp.ne.s32.totalorder %s201, %s203
      %p207 = scmp.eq.s32.totalorder %s22, 0
      %p208 = por %p206, %p207
      %p209 = scmp.ne.s32.totalorder %s201, %s203
      %p210 = scmp.eq.s32.totalorder %s27, 1
      %p211 = por %p209, %p210
      %p212 = scmp.ne.s32.totalorder %s203, %s204
      %p213 = scmp.eq.s32.totalorder %s27, 0
      %p214 = por %p212, %p213
      %p215 = scmp.ne.s32.totalorder %s203, %s204
      %p216 = scmp.eq.s32.totalorder %s28, 1
      %p217 = por %p215, %p216
      %p219 = scmp.ne.s32.totalorder %s204, %s218
      %p220 = scmp.eq.s32.totalorder %s28, 0
      %p221 = por %p219, %p220
      %s222 = ssub.s32 %s29, %s41
      %s223 = ssub.s32 %s30, %s37
      %s224 = sor.u32 %s222, %s223
      %p225 = scmp.eq.s32.totalorder %s224, 0
      %s227 = sadd.s32 %s226, 1
      %s228 = scalar_select %p225, %s226, %s227
      %p231 = pneg %p225
      %p232 = scmp.eq.s32.totalorder %s22, 1
      %p233 = por %p231, %p232
      %p234 = scmp.ne.s32.totalorder %s226, %s229
      %p235 = scmp.eq.s32.totalorder %s22, 0
      %p236 = por %p234, %p235
      %p237 = scmp.ne.s32.totalorder %s226, %s229
      %p238 = scmp.eq.s32.totalorder %s27, 1
      %p239 = por %p237, %p238
      %p240 = scmp.ne.s32.totalorder %s229, %s230
      %p241 = scmp.eq.s32.totalorder %s27, 0
      %p242 = por %p240, %p241
      %p243 = scmp.ne.s32.totalorder %s229, %s230
      %p244 = scmp.eq.s32.totalorder %s28, 1
      %p245 = por %p243, %p244
      %p247 = scmp.ne.s32.totalorder %s230, %s246
      %p248 = scmp.eq.s32.totalorder %s28, 0
      %p249 = por %p247, %p248
      %s250 = ssub.s32 %s29, %s41
      %s251 = ssub.s32 %s30, %s37
      %s252 = sor.u32 %s250, %s251
      %p253 = scmp.eq.s32.totalorder %s252, 0
      %s255 = sadd.s32 %s254, 1
      %s256 = scalar_select %p253, %s254, %s255
      %p259 = pneg %p253
      %p260 = scmp.eq.s32.totalorder %s22, 1
      %p261 = por %p259, %p260
      %p262 = scmp.ne.s32.totalorder %s254, %s257
      %p263 = scmp.eq.s32.totalorder %s22, 0
      %p264 = por %p262, %p263
      %p265 = scmp.ne.s32.totalorder %s254, %s257
      %p266 = scmp.eq.s32.totalorder %s27, 1
      %p267 = por %p265, %p266
      %p268 = scmp.ne.s32.totalorder %s257, %s258
      %p269 = scmp.eq.s32.totalorder %s27, 0
      %p270 = por %p268, %p269
      %p271 = scmp.ne.s32.totalorder %s257, %s258
      %p272 = scmp.eq.s32.totalorder %s28, 1
      %p273 = por %p271, %p272
      %p275 = scmp.ne.s32.totalorder %s258, %s274
      %p276 = scmp.eq.s32.totalorder %s28, 0
      %p277 = por %p275, %p276
      %p278 = scmp.le.s32.totalorder 1, %s22
      %p279 = scmp.lt.s32.totalorder %s22, 3
      %p280 = pnand %p278, %p279
      %p281 = pneg %p280
      // Predicated region
      $region9: #{tpu_custom_call.1} parent=5 // pred_check
        _
      $region10: #{tpu_custom_call.1} parent=5 // pred_check_branch
        %283 = sbr.rel (%p280) target = $region12
      $region11: #{tpu_custom_call.1} parent=5 // pred_region
        %s284 = ssub.s32 %s22, 1
        // Predicated region
        $region13: #{tpu_custom_call.1} parent=11 // pred_check
          %p285 = pneg %p88
        $region14: #{tpu_custom_call.1} parent=11 // pred_check_branch
          %287 = sbr.rel (%p285) target = $region16
        $region15: #{tpu_custom_call.1} parent=11 // pred_region
          %s288 = smul.u32 16, %s32
          %p289 = scmp.lt.s32.totalorder %s288, 15
          %s290 = scalar_select %p289, %s288, 15
          %s291 = smul.addr %s290, 8
          %s292 = scalar_lea.vmem %s1, %s291
          %s293 = smul.u32 16, %s32
        $region16: #{tpu_custom_call.1} parent=11 // pred_fallthru
          _
        // Predicated region
        $region17: #{tpu_custom_call.1} parent=11 // pred_check
          %p294 = pneg %p109
        $region18: #{tpu_custom_call.1} parent=11 // pred_check_branch
          %296 = sbr.rel (%p294) target = $region20
        $region19: #{tpu_custom_call.1} parent=11 // pred_region
          _
        $region20: #{tpu_custom_call.1} parent=11 // pred_fallthru
          _
        // Predicated region
        $region21: #{tpu_custom_call.1} parent=11 // pred_check
          %p297 = pneg %p130
        $region22: #{tpu_custom_call.1} parent=11 // pred_check_branch
          %299 = sbr.rel (%p297) target = $region24
        $region23: #{tpu_custom_call.1} parent=11 // pred_region
          _
        $region24: #{tpu_custom_call.1} parent=11 // pred_fallthru
          _
        // Predicated region
        $region25: #{tpu_custom_call.1} parent=11 // pred_check
          %p300 = pneg %p151
        $region26: #{tpu_custom_call.1} parent=11 // pred_check_branch
          %302 = sbr.rel (%p300) target = $region28
        $region27: #{tpu_custom_call.1} parent=11 // pred_region
          _
        $region28: #{tpu_custom_call.1} parent=11 // pred_fallthru
          _
        // Predicated region
        $region29: #{tpu_custom_call.1} parent=11 // pred_check
          %p303 = pneg %p172
        $region30: #{tpu_custom_call.1} parent=11 // pred_check_branch
          %305 = sbr.rel (%p303) target = $region32
        $region31: #{tpu_custom_call.1} parent=11 // pred_region
          _
        $region32: #{tpu_custom_call.1} parent=11 // pred_fallthru
          _
        // Predicated region
        $region33: #{tpu_custom_call.1} parent=11 // pred_check
          %p306 = pneg %p193
        $region34: #{tpu_custom_call.1} parent=11 // pred_check_branch
          %308 = sbr.rel (%p306) target = $region36
        $region35: #{tpu_custom_call.1} parent=11 // pred_region
          _
        $region36: #{tpu_custom_call.1} parent=11 // pred_fallthru
          _
        // Predicated region
        $region37: #{tpu_custom_call.1} parent=11 // pred_check
          %p309 = pneg %p214
        $region38: #{tpu_custom_call.1} parent=11 // pred_check_branch
          %311 = sbr.rel (%p309) target = $region40
        $region39: #{tpu_custom_call.1} parent=11 // pred_region
          _
        $region40: #{tpu_custom_call.1} parent=11 // pred_fallthru
          _
      $region12: #{tpu_custom_call.1} parent=5 // pred_fallthru
        _
      %p312 = scmp.lt.s32.totalorder %s22, 2
      // Predicated region
      $region41: #{tpu_custom_call.1} parent=5 // pred_check
        %p313 = pneg %p312
      $region42: #{tpu_custom_call.1} parent=5 // pred_check_branch
        %315 = sbr.rel (%p313) target = $region44
      $region43: #{tpu_custom_call.1} parent=5 // pred_region
        // Predicated region
        $region45: #{tpu_custom_call.1} parent=43 // pred_check
          %p316 = pneg %p56
        $region46: #{tpu_custom_call.1} parent=43 // pred_check_branch
          %318 = sbr.rel (%p316) target = $region48
        $region47: #{tpu_custom_call.1} parent=43 // pred_region
          %s319 = smul.u32 16, %s30
          %p320 = scmp.lt.s32.totalorder %s29, 1
          %s321 = scalar_select %p320, %s29, 1
          %p322 = scmp.lt.s32.totalorder %s319, 15
          %s323 = scalar_select %p322, %s319, 15
          %s324 = smul.addr %s323, 2
          %s325 = smul.addr %s321, 32
          %s326 = sadd.s32 %s324, %s325
          %s327 = smul.addr %s326, 4
          %s328 = scalar_lea.vmem %s0, %s327
          %s329 = smul.u32 16, %s30
        $region48: #{tpu_custom_call.1} parent=43 // pred_fallthru
          _
      $region44: #{tpu_custom_call.1} parent=5 // pred_fallthru
        _
      %p330 = scmp.le.s32.totalorder 1, %s22
      %p331 = scmp.lt.s32.totalorder %s22, 3
      %p332 = pnand %p330, %p331
      %p333 = pneg %p332
      // Predicated region
      $region49: #{tpu_custom_call.1} parent=5 // pred_check
        _
      $region50: #{tpu_custom_call.1} parent=5 // pred_check_branch
        %335 = sbr.rel (%p332) target = $region52
      $region51: #{tpu_custom_call.1} parent=5 // pred_region
        %s336 = ssub.s32 %s22, 1
        %s337 = smul.u32 16, %s32
        %p338 = scmp.lt.s32.totalorder %s31, 1
        %s339 = scalar_select %p338, %s31, 1
        %p340 = scmp.lt.s32.totalorder %s337, 15
        %s341 = scalar_select %p340, %s337, 15
        %s342 = smul.addr %s341, 2
        %s343 = smul.addr %s339, 32
        %s344 = sadd.s32 %s342, %s343
        %s345 = smul.addr %s344, 4
        %s346 = scalar_lea.vmem %s0, %s345
        %p347 = pneg %p62
        %p348 = pneg %p59
        %s349 = smul.u32 16, %s32
        %p350 = scmp.lt.s32.totalorder %s349, 15
        %s351 = scalar_select %p350, %s349, 15
        %s352 = smul.addr %s351, 8
        %s353 = scalar_lea.vmem %s1, %s352
        %p354 = pneg %p88
        %p355 = pneg %p85
        %p356 = pneg %p109
        %p357 = pneg %p106
        %p358 = pneg %p130
        %p359 = pneg %p127
        %p360 = pneg %p151
        %p361 = pneg %p148
        %p362 = pneg %p172
        %p363 = pneg %p169
        %p364 = pneg %p193
        %p365 = pneg %p190
        %p366 = pneg %p214
        %p367 = pneg %p211
        %p368 = pneg %p242
        %p369 = pneg %p239
        %s370 = sand.u32 %s229, 1
        %s371 = scalar_lea.sflag [#allocation3], %s370
        %s372 = sand.u32 %s229, 1
        %s373 = smul.addr %s372, 128
        %s374 = scalar_lea.vmem [#allocation2], %s373
        %p375 = pneg %p270
        %p376 = pneg %p267
        %s377 = sand.u32 %s257, 1
        %s378 = scalar_lea.sflag [#allocation5], %s377
        %s379 = sand.u32 %s257, 1
        %s380 = smul.addr %s379, 128
        %s381 = scalar_lea.vmem [#allocation4], %s380
        %s382 = smul.u32 16, %s32
        %p383 = scmp.lt.s32.totalorder %s31, 1
        %s384 = scalar_select %p383, %s31, 1
        %p385 = scmp.lt.s32.totalorder %s382, 15
        %s386 = scalar_select %p385, %s382, 15
        %s387 = smul.addr %s386, 2
        %s388 = smul.addr %s384, 32
        %s389 = sadd.s32 %s387, %s388
        %s390 = smul.addr %s389, 4
        %s391 = scalar_lea.vmem %s0, %s390
        %s392 = smul.u32 16, %s32
        %s393 = smul.u32 16, %s32
        %p394 = scmp.lt.s32.totalorder %s393, 15
        %s395 = scalar_select %p394, %s393, 15
        %s396 = smul.addr %s395, 8
        %s397 = scalar_lea.vmem %s1, %s396
        %s398 = smul.u32 16, %s32
        %s399 = smul.u32 16, %s32
        %s400 = smul.u32 16, %s32
        %v402 = vld [vmem:[%s391] sm:$0xff]
        %v403 = vld [vmem:[%s391 + $0x8] sm:$0xff]
        %v404 = vld [vmem:[%s391 + $0x10] sm:$0xff]
        %v405 = vld [vmem:[%s391 + $0x18] sm:$0xff]
        %v406 = vld [vmem:[%s391 + $0x20] sm:$0xff]
        %v407 = vld [vmem:[%s391 + $0x28] sm:$0xff]
        %v408 = vld [vmem:[%s391 + $0x30] sm:$0xff]
        %v409 = vld [vmem:[%s391 + $0x38] sm:$0xff]
        %v410 = vld [vmem:[%s391 + $0x40] sm:$0xff]
        %v411 = vld [vmem:[%s391 + $0x48] sm:$0xff]
        %v412 = vld [vmem:[%s391 + $0x50] sm:$0xff]
        %v413 = vld [vmem:[%s391 + $0x58] sm:$0xff]
        %v414 = vld [vmem:[%s391 + $0x60] sm:$0xff]
        %v415 = vld [vmem:[%s391 + $0x68] sm:$0xff]
        %v416 = vld [vmem:[%s391 + $0x70] sm:$0xff]
        %v417 = vld [vmem:[%s391 + $0x78] sm:$0xff]
        %v418 = vld [vmem:[%s2] sm:$0xf]
        %v419 = vld [vmem:[%s2 + $0x4] sm:$0xf]
        %v420 = vld [vmem:[%s2 + $0x8] sm:$0xf]
        %v421 = vld [vmem:[%s2 + $0xc] sm:$0xf]
        %v422 = vld [vmem:[%s2 + $0x10] sm:$0xf]
        %v423 = vld [vmem:[%s2 + $0x14] sm:$0xf]
        %v424 = vld [vmem:[%s2 + $0x18] sm:$0xf]
        %v425 = vld [vmem:[%s2 + $0x1c] sm:$0xf]
        %v426 = vld [vmem:[%s2 + $0x20] sm:$0xf]
        %v427 = vld [vmem:[%s2 + $0x24] sm:$0xf]
        %v428 = vld [vmem:[%s2 + $0x28] sm:$0xf]
        %v429 = vld [vmem:[%s2 + $0x2c] sm:$0xf]
        %v430 = vld [vmem:[%s2 + $0x30] sm:$0xf]
        %v431 = vld [vmem:[%s2 + $0x34] sm:$0xf]
        %v432 = vld [vmem:[%s2 + $0x38] sm:$0xf]
        %v433 = vld [vmem:[%s2 + $0x3c] sm:$0xf]
        %v434 = vld [vmem:[%s2 + $0x40] sm:$0xf]
        %v435 = vld [vmem:[%s2 + $0x44] sm:$0xf]
        %v436 = vld [vmem:[%s3] sm:$0x1]
        %v438 = vperm.slane %v436, 0
        %v456 = vunpack.c.l.b16 %v402
        %v457 = vunpack.c.h.b16 %v402
        %v458 = vunpack.c.l.b16 %v403
        %v459 = vunpack.c.h.b16 %v403
        %v460 = vunpack.c.l.b16 %v404
        %v461 = vunpack.c.h.b16 %v404
        %v462 = vunpack.c.l.b16 %v405
        %v463 = vunpack.c.h.b16 %v405
        %v464 = vunpack.c.l.b16 %v406
        %v465 = vunpack.c.h.b16 %v406
        %v466 = vunpack.c.l.b16 %v407
        %v467 = vunpack.c.h.b16 %v407
        %v468 = vunpack.c.l.b16 %v408
        %v469 = vunpack.c.h.b16 %v408
        %v470 = vunpack.c.l.b16 %v409
        %v471 = vunpack.c.h.b16 %v409
        %v472 = vunpack.c.l.b16 %v410
        %v473 = vunpack.c.h.b16 %v410
        %v474 = vunpack.c.l.b16 %v411
        %v475 = vunpack.c.h.b16 %v411
        %v476 = vunpack.c.l.b16 %v412
        %v477 = vunpack.c.h.b16 %v412
        %v478 = vunpack.c.l.b16 %v413
        %v479 = vunpack.c.h.b16 %v413
        %v480 = vunpack.c.l.b16 %v414
        %v481 = vunpack.c.h.b16 %v414
        %v482 = vunpack.c.l.b16 %v415
        %v483 = vunpack.c.h.b16 %v415
        %v484 = vunpack.c.l.b16 %v416
        %v485 = vunpack.c.h.b16 %v416
        %v486 = vunpack.c.l.b16 %v417
        %v487 = vunpack.c.h.b16 %v417
        %v488 = vpack.c.b16 %v458, %v456
        %v489 = vpack.c.b16 %v459, %v457
        %v490 = vpack.c.b16 %v462, %v460
        %v491 = vpack.c.b16 %v463, %v461
        %v492 = vpack.c.b16 %v466, %v464
        %v493 = vpack.c.b16 %v467, %v465
        %v494 = vpack.c.b16 %v470, %v468
        %v495 = vpack.c.b16 %v471, %v469
        %v496 = vpack.c.b16 %v474, %v472
        %v497 = vpack.c.b16 %v475, %v473
        %v498 = vpack.c.b16 %v478, %v476
        %v499 = vpack.c.b16 %v479, %v477
        %v500 = vpack.c.b16 %v482, %v480
        %v501 = vpack.c.b16 %v483, %v481
        %v502 = vpack.c.b16 %v486, %v484
        %v503 = vpack.c.b16 %v487, %v485
        %v530 = vunpack.c.l.b16 %v418
        %v531 = vunpack.c.l.b16 %v419
        %v532 = vunpack.c.l.b16 %v420
        %v533 = vunpack.c.l.b16 %v421
        %v534 = vunpack.c.l.b16 %v422
        %v535 = vunpack.c.l.b16 %v423
        %v536 = vunpack.c.l.b16 %v424
        %v537 = vunpack.c.l.b16 %v425
        %v538 = vunpack.c.l.b16 %v426
        %v539 = vunpack.c.l.b16 %v427
        %v540 = vunpack.c.l.b16 %v428
        %v541 = vunpack.c.l.b16 %v429
        %v542 = vunpack.c.l.b16 %v430
        %v543 = vunpack.c.l.b16 %v431
        %v544 = vunpack.c.l.b16 %v432
        %v545 = vunpack.c.l.b16 %v433
        %v546 = vunpack.c.l.b16 %v434
        %v547 = vunpack.c.l.b16 %v435
        %v548 = vpack.c.b16 %v531, %v530
        %v549 = vpack.c.b16 %v533, %v532
        %v550 = vpack.c.b16 %v535, %v534
        %v551 = vpack.c.b16 %v537, %v536
        %v552 = vpack.c.b16 %v539, %v538
        %v553 = vpack.c.b16 %v541, %v540
        %v554 = vpack.c.b16 %v543, %v542
        %v555 = vpack.c.b16 %v545, %v544
        %v556 = vpack.c.b16 %v547, %v546
        %vm566 = vcmask 130048
        %v568 = vsel %vm566, %v489, 0
        %v571 = vsel %vm566, %v491, 0
        %v574 = vsel %vm566, %v493, 0
        %v577 = vsel %vm566, %v495, 0
        %v580 = vsel %vm566, %v497, 0
        %v583 = vsel %vm566, %v499, 0
        %v586 = vsel %vm566, %v501, 0
        %v589 = vsel %vm566, %v503, 0
        %591 = vmatpush.bf16.msra.mxu0 %v555
        %592 = vmatpush.bf16.msra.mxu0 %v554
        %593 = vmatpush.bf16.msra.mxu0 %v553
        %594 = vmatpush.bf16.msra.mxu0 %v552
        %595 = vmatpush.bf16.msra.mxu0 %v551
        %596 = vmatpush.bf16.msra.mxu0 %v550
        %597 = vmatpush.bf16.msra.mxu0 %v549
        %598 = vmatpush.bf16.msra.mxu0 %v548
        %599 = vmatmul.bf16.gmra.mxu0 %v488
        %v600 = vpop.f32.mrf.mxu0
        %v601 = vadd.f32 %v438, %v600
        %v602 = vpop.f32.mrf.mxu0
        %v603 = vadd.f32 %v438, %v602
        %604 = vmatmul.bf16.gmra.mxu0 %v490
        %v605 = vpop.f32.mrf.mxu0
        %v606 = vadd.f32 %v438, %v605
        %v607 = vpop.f32.mrf.mxu0
        %v608 = vadd.f32 %v438, %v607
        %609 = vmatmul.bf16.gmra.mxu0 %v492
        %v610 = vpop.f32.mrf.mxu0
        %v611 = vadd.f32 %v438, %v610
        %v612 = vpop.f32.mrf.mxu0
        %v613 = vadd.f32 %v438, %v612
        %614 = vmatmul.bf16.gmra.mxu0 %v494
        %v615 = vpop.f32.mrf.mxu0
        %v616 = vadd.f32 %v438, %v615
        %v617 = vpop.f32.mrf.mxu0
        %v618 = vadd.f32 %v438, %v617
        %619 = vmatmul.bf16.gmra.mxu0 %v496
        %v620 = vpop.f32.mrf.mxu0
        %v621 = vadd.f32 %v438, %v620
        %v622 = vpop.f32.mrf.mxu0
        %v623 = vadd.f32 %v438, %v622
        %624 = vmatmul.bf16.gmra.mxu0 %v498
        %v625 = vpop.f32.mrf.mxu0
        %v626 = vadd.f32 %v438, %v625
        %v627 = vpop.f32.mrf.mxu0
        %v628 = vadd.f32 %v438, %v627
        %629 = vmatmul.bf16.gmra.mxu0 %v500
        %v630 = vpop.f32.mrf.mxu0
        %v631 = vadd.f32 %v438, %v630
        %v632 = vpop.f32.mrf.mxu0
        %v633 = vadd.f32 %v438, %v632
        %634 = vmatmul.bf16.gmra.mxu0 %v502
        %v635 = vpop.f32.mrf.mxu0
        %v636 = vadd.f32 %v438, %v635
        %v637 = vpop.f32.mrf.mxu0
        %v638 = vadd.f32 %v438, %v637
        %639 = vdwg.mxu0
        %640 = vmatpush.bf16.msra.mxu0 0
        %641 = vmatpush.bf16.msra.mxu0 0
        %642 = vmatpush.bf16.msra.mxu0 0
        %643 = vmatpush.bf16.msra.mxu0 0
        %644 = vmatpush.bf16.msra.mxu0 0
        %645 = vmatpush.bf16.msra.mxu0 0
        %646 = vmatpush.bf16.msra.mxu0 0
        %647 = vmatpush.bf16.msra.mxu0 %v556
        %648 = vmatmul.bf16.gmra.mxu0 %v568
        %v649 = vpop.f32.mrf.mxu0
        %v650 = vadd.f32 %v601, %v649
        %v651 = vpop.f32.mrf.mxu0
        %v652 = vadd.f32 %v603, %v651
        %653 = vmatmul.bf16.gmra.mxu0 %v571
        %v654 = vpop.f32.mrf.mxu0
        %v655 = vadd.f32 %v606, %v654
        %v656 = vpop.f32.mrf.mxu0
        %v657 = vadd.f32 %v608, %v656
        %658 = vmatmul.bf16.gmra.mxu0 %v574
        %v659 = vpop.f32.mrf.mxu0
        %v660 = vadd.f32 %v611, %v659
        %v661 = vpop.f32.mrf.mxu0
        %v662 = vadd.f32 %v613, %v661
        %663 = vmatmul.bf16.gmra.mxu0 %v577
        %v664 = vpop.f32.mrf.mxu0
        %v665 = vadd.f32 %v616, %v664
        %v666 = vpop.f32.mrf.mxu0
        %v667 = vadd.f32 %v618, %v666
        %668 = vmatmul.bf16.gmra.mxu0 %v580
        %v669 = vpop.f32.mrf.mxu0
        %v670 = vadd.f32 %v621, %v669
        %v671 = vpop.f32.mrf.mxu0
        %v672 = vadd.f32 %v623, %v671
        %673 = vmatmul.bf16.gmra.mxu0 %v583
        %v674 = vpop.f32.mrf.mxu0
        %v675 = vadd.f32 %v626, %v674
        %v676 = vpop.f32.mrf.mxu0
        %v677 = vadd.f32 %v628, %v676
        %678 = vmatmul.bf16.gmra.mxu0 %v586
        %v679 = vpop.f32.mrf.mxu0
        %v680 = vadd.f32 %v631, %v679
        %v681 = vpop.f32.mrf.mxu0
        %v682 = vadd.f32 %v633, %v681
        %683 = vmatmul.bf16.gmra.mxu0 %v589
        %v684 = vpop.f32.mrf.mxu0
        %v685 = vadd.f32 %v636, %v684
        %v686 = vpop.f32.mrf.mxu0
        %v687 = vadd.f32 %v638, %v686
        %688 = vdwg.mxu0
        %v689 = vld [vmem:[%s397] sm:$0xff]
        %v690 = vld [vmem:[%s397 + $0x8] sm:$0xff]
        %v691 = vld [vmem:[%s397 + $0x10] sm:$0xff]
        %v692 = vld [vmem:[%s397 + $0x18] sm:$0xff]
        %v693 = vld [vmem:[%s397 + $0x20] sm:$0xff]
        %v694 = vld [vmem:[%s397 + $0x28] sm:$0xff]
        %v695 = vld [vmem:[%s397 + $0x30] sm:$0xff]
        %v696 = vld [vmem:[%s397 + $0x38] sm:$0xff]
        %v697 = vld [vmem:[%s397 + $0x40] sm:$0xff]
        %v698 = vld [vmem:[%s397 + $0x48] sm:$0xff]
        %v699 = vld [vmem:[%s397 + $0x50] sm:$0xff]
        %v700 = vld [vmem:[%s397 + $0x58] sm:$0xff]
        %v701 = vld [vmem:[%s397 + $0x60] sm:$0xff]
        %v702 = vld [vmem:[%s397 + $0x68] sm:$0xff]
        %v703 = vld [vmem:[%s397 + $0x70] sm:$0xff]
        %v704 = vld [vmem:[%s397 + $0x78] sm:$0xff]
        %706 = vset.pattern.permute.xlu0 0
        %707 = vperm.xlu0 %706, %v689
        %v708 = vpop.permute.xlu0 %707
        %711 = vset.pattern.permute.xlu0 0
        %712 = vperm.xlu0 %711, %v690
        %v713 = vpop.permute.xlu0 %712
        %716 = vset.pattern.permute.xlu0 0
        %717 = vperm.xlu0 %716, %v691
        %v718 = vpop.permute.xlu0 %717
        %721 = vset.pattern.permute.xlu0 0
        %722 = vperm.xlu0 %721, %v692
        %v723 = vpop.permute.xlu0 %722
        %726 = vset.pattern.permute.xlu0 0
        %727 = vperm.xlu0 %726, %v693
        %v728 = vpop.permute.xlu0 %727
        %731 = vset.pattern.permute.xlu0 0
        %732 = vperm.xlu0 %731, %v694
        %v733 = vpop.permute.xlu0 %732
        %736 = vset.pattern.permute.xlu0 0
        %737 = vperm.xlu0 %736, %v695
        %v738 = vpop.permute.xlu0 %737
        %741 = vset.pattern.permute.xlu0 0
        %742 = vperm.xlu0 %741, %v696
        %v743 = vpop.permute.xlu0 %742
        %746 = vset.pattern.permute.xlu0 0
        %747 = vperm.xlu0 %746, %v697
        %v748 = vpop.permute.xlu0 %747
        %751 = vset.pattern.permute.xlu0 0
        %752 = vperm.xlu0 %751, %v698
        %v753 = vpop.permute.xlu0 %752
        %756 = vset.pattern.permute.xlu0 0
        %757 = vperm.xlu0 %756, %v699
        %v758 = vpop.permute.xlu0 %757
        %761 = vset.pattern.permute.xlu0 0
        %762 = vperm.xlu0 %761, %v700
        %v763 = vpop.permute.xlu0 %762
        %766 = vset.pattern.permute.xlu0 0
        %767 = vperm.xlu0 %766, %v701
        %v768 = vpop.permute.xlu0 %767
        %771 = vset.pattern.permute.xlu0 0
        %772 = vperm.xlu0 %771, %v702
        %v773 = vpop.permute.xlu0 %772
        %776 = vset.pattern.permute.xlu0 0
        %777 = vperm.xlu0 %776, %v703
        %v778 = vpop.permute.xlu0 %777
        %781 = vset.pattern.permute.xlu0 0
        %782 = vperm.xlu0 %781, %v704
        %v783 = vpop.permute.xlu0 %782
        %v785 = vadd.f32 %v650, %v708
        %v786 = vadd.f32 %v652, %v713
        %v787 = vadd.f32 %v655, %v718
        %v788 = vadd.f32 %v657, %v723
        %v789 = vadd.f32 %v660, %v728
        %v790 = vadd.f32 %v662, %v733
        %v791 = vadd.f32 %v665, %v738
        %v792 = vadd.f32 %v667, %v743
        %v793 = vadd.f32 %v670, %v748
        %v794 = vadd.f32 %v672, %v753
        %v795 = vadd.f32 %v675, %v758
        %v796 = vadd.f32 %v677, %v763
        %v797 = vadd.f32 %v680, %v768
        %v798 = vadd.f32 %v682, %v773
        %v799 = vadd.f32 %v685, %v778
        %v800 = vadd.f32 %v687, %v783
        %v801 = vpack.c.bf16 %v785, %v785
        %v802 = vpack.c.bf16 %v786, %v786
        %v803 = vpack.c.bf16 %v787, %v787
        %v804 = vpack.c.bf16 %v788, %v788
        %v805 = vpack.c.bf16 %v789, %v789
        %v806 = vpack.c.bf16 %v790, %v790
        %v807 = vpack.c.bf16 %v791, %v791
        %v808 = vpack.c.bf16 %v792, %v792
        %v809 = vpack.c.bf16 %v793, %v793
        %v810 = vpack.c.bf16 %v794, %v794
        %v811 = vpack.c.bf16 %v795, %v795
        %v812 = vpack.c.bf16 %v796, %v796
        %v813 = vpack.c.bf16 %v797, %v797
        %v814 = vpack.c.bf16 %v798, %v798
        %v815 = vpack.c.bf16 %v799, %v799
        %v816 = vpack.c.bf16 %v800, %v800
        %v817 = vld [vmem:[%s4] sm:$0xf]
        %v818 = vld [vmem:[%s4 + $0x4] sm:$0xf]
        %v819 = vld [vmem:[%s4 + $0x8] sm:$0xf]
        %v820 = vld [vmem:[%s4 + $0xc] sm:$0xf]
        %v821 = vld [vmem:[%s4 + $0x10] sm:$0xf]
        %v822 = vld [vmem:[%s4 + $0x14] sm:$0xf]
        %v823 = vld [vmem:[%s4 + $0x18] sm:$0xf]
        %v824 = vld [vmem:[%s4 + $0x1c] sm:$0xf]
        %v825 = vld [vmem:[%s4 + $0x20] sm:$0xf]
        %v826 = vld [vmem:[%s4 + $0x24] sm:$0xf]
        %v827 = vld [vmem:[%s4 + $0x28] sm:$0xf]
        %v828 = vld [vmem:[%s4 + $0x2c] sm:$0xf]
        %v829 = vld [vmem:[%s4 + $0x30] sm:$0xf]
        %v830 = vld [vmem:[%s4 + $0x34] sm:$0xf]
        %v831 = vld [vmem:[%s4 + $0x38] sm:$0xf]
        %v832 = vld [vmem:[%s4 + $0x3c] sm:$0xf]
        %v833 = vld [vmem:[%s5] sm:$0x1]
        %v835 = vperm.slane %v833, 0
        %v853 = vunpack.c.l.b16 %v801
        %v854 = vunpack.c.l.b16 %v802
        %v855 = vunpack.c.l.b16 %v803
        %v856 = vunpack.c.l.b16 %v804
        %v857 = vunpack.c.l.b16 %v805
        %v858 = vunpack.c.l.b16 %v806
        %v859 = vunpack.c.l.b16 %v807
        %v860 = vunpack.c.l.b16 %v808
        %v861 = vunpack.c.l.b16 %v809
        %v862 = vunpack.c.l.b16 %v810
        %v863 = vunpack.c.l.b16 %v811
        %v864 = vunpack.c.l.b16 %v812
        %v865 = vunpack.c.l.b16 %v813
        %v866 = vunpack.c.l.b16 %v814
        %v867 = vunpack.c.l.b16 %v815
        %v868 = vunpack.c.l.b16 %v816
        %v869 = vpack.c.b16 %v854, %v853
        %v870 = vpack.c.b16 %v856, %v855
        %v871 = vpack.c.b16 %v858, %v857
        %v872 = vpack.c.b16 %v860, %v859
        %v873 = vpack.c.b16 %v862, %v861
        %v874 = vpack.c.b16 %v864, %v863
        %v875 = vpack.c.b16 %v866, %v865
        %v876 = vpack.c.b16 %v868, %v867
        %v901 = vunpack.c.l.b16 %v817
        %v902 = vunpack.c.l.b16 %v818
        %v903 = vunpack.c.l.b16 %v819
        %v904 = vunpack.c.l.b16 %v820
        %v905 = vunpack.c.l.b16 %v821
        %v906 = vunpack.c.l.b16 %v822
        %v907 = vunpack.c.l.b16 %v823
        %v908 = vunpack.c.l.b16 %v824
        %v909 = vunpack.c.l.b16 %v825
        %v910 = vunpack.c.l.b16 %v826
        %v911 = vunpack.c.l.b16 %v827
        %v912 = vunpack.c.l.b16 %v828
        %v913 = vunpack.c.l.b16 %v829
        %v914 = vunpack.c.l.b16 %v830
        %v915 = vunpack.c.l.b16 %v831
        %v916 = vunpack.c.l.b16 %v832
        %v917 = vpack.c.b16 %v902, %v901
        %v918 = vpack.c.b16 %v904, %v903
        %v919 = vpack.c.b16 %v906, %v905
        %v920 = vpack.c.b16 %v908, %v907
        %v921 = vpack.c.b16 %v910, %v909
        %v922 = vpack.c.b16 %v912, %v911
        %v923 = vpack.c.b16 %v914, %v913
        %v924 = vpack.c.b16 %v916, %v915
        %933 = vmatpush.bf16.msra.mxu0 %v924
        %934 = vmatpush.bf16.msra.mxu0 %v923
        %935 = vmatpush.bf16.msra.mxu0 %v922
        %936 = vmatpush.bf16.msra.mxu0 %v921
        %937 = vmatpush.bf16.msra.mxu0 %v920
        %938 = vmatpush.bf16.msra.mxu0 %v919
        %939 = vmatpush.bf16.msra.mxu0 %v918
        %940 = vmatpush.bf16.msra.mxu0 %v917
        %941 = vmatmul.bf16.gmra.mxu0 %v869
        %v942 = vpop.f32.mrf.mxu0
        %v943 = vadd.f32 %v835, %v942
        %v944 = vpop.f32.mrf.mxu0
        %v945 = vadd.f32 %v835, %v944
        %946 = vmatmul.bf16.gmra.mxu0 %v870
        %v947 = vpop.f32.mrf.mxu0
        %v948 = vadd.f32 %v835, %v947
        %v949 = vpop.f32.mrf.mxu0
        %v950 = vadd.f32 %v835, %v949
        %951 = vmatmul.bf16.gmra.mxu0 %v871
        %v952 = vpop.f32.mrf.mxu0
        %v953 = vadd.f32 %v835, %v952
        %v954 = vpop.f32.mrf.mxu0
        %v955 = vadd.f32 %v835, %v954
        %956 = vmatmul.bf16.gmra.mxu0 %v872
        %v957 = vpop.f32.mrf.mxu0
        %v958 = vadd.f32 %v835, %v957
        %v959 = vpop.f32.mrf.mxu0
        %v960 = vadd.f32 %v835, %v959
        %961 = vmatmul.bf16.gmra.mxu0 %v873
        %v962 = vpop.f32.mrf.mxu0
        %v963 = vadd.f32 %v835, %v962
        %v964 = vpop.f32.mrf.mxu0
        %v965 = vadd.f32 %v835, %v964
        %966 = vmatmul.bf16.gmra.mxu0 %v874
        %v967 = vpop.f32.mrf.mxu0
        %v968 = vadd.f32 %v835, %v967
        %v969 = vpop.f32.mrf.mxu0
        %v970 = vadd.f32 %v835, %v969
        %971 = vmatmul.bf16.gmra.mxu0 %v875
        %v972 = vpop.f32.mrf.mxu0
        %v973 = vadd.f32 %v835, %v972
        %v974 = vpop.f32.mrf.mxu0
        %v975 = vadd.f32 %v835, %v974
        %976 = vmatmul.bf16.gmra.mxu0 %v876
        %v977 = vpop.f32.mrf.mxu0
        %v978 = vadd.f32 %v835, %v977
        %v979 = vpop.f32.mrf.mxu0
        %v980 = vadd.f32 %v835, %v979
        %981 = vdwg.mxu0
        %v982 = vld [vmem:[%s6] sm:$0xff]
        %v983 = vld [vmem:[%s6 + $0x8] sm:$0xff]
        %v984 = vld [vmem:[%s6 + $0x10] sm:$0xff]
        %v985 = vld [vmem:[%s6 + $0x18] sm:$0xff]
        %v986 = vld [vmem:[%s6 + $0x20] sm:$0xff]
        %v987 = vld [vmem:[%s6 + $0x28] sm:$0xff]
        %v988 = vld [vmem:[%s6 + $0x30] sm:$0xff]
        %v989 = vld [vmem:[%s6 + $0x38] sm:$0xff]
        %v990 = vld [vmem:[%s6 + $0x40] sm:$0xff]
        %v991 = vld [vmem:[%s6 + $0x48] sm:$0xff]
        %v992 = vld [vmem:[%s6 + $0x50] sm:$0xff]
        %v993 = vld [vmem:[%s6 + $0x58] sm:$0xff]
        %v994 = vld [vmem:[%s6 + $0x60] sm:$0xff]
        %v995 = vld [vmem:[%s6 + $0x68] sm:$0xff]
        %v996 = vld [vmem:[%s6 + $0x70] sm:$0xff]
        %v997 = vld [vmem:[%s6 + $0x78] sm:$0xff]
        %v998 = vld [vmem:[%s7] sm:$0x3]
        %v1000 = vperm.slane %v998, 0
        %v1001 = vperm.slane %v998, 1
        %v1020 = vunpack.c.l.b16 %v982
        %v1021 = vunpack.c.h.b16 %v982
        %v1022 = vunpack.c.l.b16 %v983
        %v1023 = vunpack.c.h.b16 %v983
        %v1024 = vunpack.c.l.b16 %v984
        %v1025 = vunpack.c.h.b16 %v984
        %v1026 = vunpack.c.l.b16 %v985
        %v1027 = vunpack.c.h.b16 %v985
        %v1028 = vunpack.c.l.b16 %v986
        %v1029 = vunpack.c.h.b16 %v986
        %v1030 = vunpack.c.l.b16 %v987
        %v1031 = vunpack.c.h.b16 %v987
        %v1032 = vunpack.c.l.b16 %v988
        %v1033 = vunpack.c.h.b16 %v988
        %v1034 = vunpack.c.l.b16 %v989
        %v1035 = vunpack.c.h.b16 %v989
        %v1036 = vunpack.c.l.b16 %v990
        %v1037 = vunpack.c.h.b16 %v990
        %v1038 = vunpack.c.l.b16 %v991
        %v1039 = vunpack.c.h.b16 %v991
        %v1040 = vunpack.c.l.b16 %v992
        %v1041 = vunpack.c.h.b16 %v992
        %v1042 = vunpack.c.l.b16 %v993
        %v1043 = vunpack.c.h.b16 %v993
        %v1044 = vunpack.c.l.b16 %v994
        %v1045 = vunpack.c.h.b16 %v994
        %v1046 = vunpack.c.l.b16 %v995
        %v1047 = vunpack.c.h.b16 %v995
        %v1048 = vunpack.c.l.b16 %v996
        %v1049 = vunpack.c.h.b16 %v996
        %v1050 = vunpack.c.l.b16 %v997
        %v1051 = vunpack.c.h.b16 %v997
        %v1052 = vpack.c.b16 %v1022, %v1020
        %v1053 = vpack.c.b16 %v1023, %v1021
        %v1054 = vpack.c.b16 %v1026, %v1024
        %v1055 = vpack.c.b16 %v1027, %v1025
        %v1056 = vpack.c.b16 %v1030, %v1028
        %v1057 = vpack.c.b16 %v1031, %v1029
        %v1058 = vpack.c.b16 %v1034, %v1032
        %v1059 = vpack.c.b16 %v1035, %v1033
        %v1060 = vpack.c.b16 %v1038, %v1036
        %v1061 = vpack.c.b16 %v1039, %v1037
        %v1062 = vpack.c.b16 %v1042, %v1040
        %v1063 = vpack.c.b16 %v1043, %v1041
        %v1064 = vpack.c.b16 %v1046, %v1044
        %v1065 = vpack.c.b16 %v1047, %v1045
        %v1066 = vpack.c.b16 %v1050, %v1048
        %v1067 = vpack.c.b16 %v1051, %v1049
        %1084 = vmatpush.bf16.msra.mxu0 %v1066
        %1085 = vmatpush.bf16.msra.mxu0 %v1064
        %1086 = vmatpush.bf16.msra.mxu0 %v1062
        %1087 = vmatpush.bf16.msra.mxu0 %v1060
        %1088 = vmatpush.bf16.msra.mxu0 %v1058
        %1089 = vmatpush.bf16.msra.mxu0 %v1056
        %1090 = vmatpush.bf16.msra.mxu0 %v1054
        %1091 = vmatpush.bf16.msra.mxu0 %v1052
        %1092 = vmatmul.bf16.gmra.mxu0 %v869
        %v1093 = vpop.f32.mrf.mxu0
        %v1094 = vadd.f32 %v1000, %v1093
        %v1095 = vpop.f32.mrf.mxu0
        %v1096 = vadd.f32 %v1000, %v1095
        %1097 = vmatmul.bf16.gmra.mxu0 %v870
        %v1098 = vpop.f32.mrf.mxu0
        %v1099 = vadd.f32 %v1000, %v1098
        %v1100 = vpop.f32.mrf.mxu0
        %v1101 = vadd.f32 %v1000, %v1100
        %1102 = vmatmul.bf16.gmra.mxu0 %v871
        %v1103 = vpop.f32.mrf.mxu0
        %v1104 = vadd.f32 %v1000, %v1103
        %v1105 = vpop.f32.mrf.mxu0
        %v1106 = vadd.f32 %v1000, %v1105
        %1107 = vmatmul.bf16.gmra.mxu0 %v872
        %v1108 = vpop.f32.mrf.mxu0
        %v1109 = vadd.f32 %v1000, %v1108
        %v1110 = vpop.f32.mrf.mxu0
        %v1111 = vadd.f32 %v1000, %v1110
        %1112 = vmatmul.bf16.gmra.mxu0 %v873
        %v1113 = vpop.f32.mrf.mxu0
        %v1114 = vadd.f32 %v1000, %v1113
        %v1115 = vpop.f32.mrf.mxu0
        %v1116 = vadd.f32 %v1000, %v1115
        %1117 = vmatmul.bf16.gmra.mxu0 %v874
        %v1118 = vpop.f32.mrf.mxu0
        %v1119 = vadd.f32 %v1000, %v1118
        %v1120 = vpop.f32.mrf.mxu0
        %v1121 = vadd.f32 %v1000, %v1120
        %1122 = vmatmul.bf16.gmra.mxu0 %v875
        %v1123 = vpop.f32.mrf.mxu0
        %v1124 = vadd.f32 %v1000, %v1123
        %v1125 = vpop.f32.mrf.mxu0
        %v1126 = vadd.f32 %v1000, %v1125
        %1127 = vmatmul.bf16.gmra.mxu0 %v876
        %v1128 = vpop.f32.mrf.mxu0
        %v1129 = vadd.f32 %v1000, %v1128
        %v1130 = vpop.f32.mrf.mxu0
        %v1131 = vadd.f32 %v1000, %v1130
        %1132 = vdwg.mxu0
        %1133 = vmatpush.bf16.msra.mxu0 %v1067
        %1134 = vmatpush.bf16.msra.mxu0 %v1065
        %1135 = vmatpush.bf16.msra.mxu0 %v1063
        %1136 = vmatpush.bf16.msra.mxu0 %v1061
        %1137 = vmatpush.bf16.msra.mxu0 %v1059
        %1138 = vmatpush.bf16.msra.mxu0 %v1057
        %1139 = vmatpush.bf16.msra.mxu0 %v1055
        %1140 = vmatpush.bf16.msra.mxu0 %v1053
        %1141 = vmatmul.bf16.gmra.mxu0 %v869
        %v1142 = vpop.f32.mrf.mxu0
        %v1143 = vadd.f32 %v1001, %v1142
        %v1144 = vpop.f32.mrf.mxu0
        %v1145 = vadd.f32 %v1001, %v1144
        %1146 = vmatmul.bf16.gmra.mxu0 %v870
        %v1147 = vpop.f32.mrf.mxu0
        %v1148 = vadd.f32 %v1001, %v1147
        %v1149 = vpop.f32.mrf.mxu0
        %v1150 = vadd.f32 %v1001, %v1149
        %1151 = vmatmul.bf16.gmra.mxu0 %v871
        %v1152 = vpop.f32.mrf.mxu0
        %v1153 = vadd.f32 %v1001, %v1152
        %v1154 = vpop.f32.mrf.mxu0
        %v1155 = vadd.f32 %v1001, %v1154
        %1156 = vmatmul.bf16.gmra.mxu0 %v872
        %v1157 = vpop.f32.mrf.mxu0
        %v1158 = vadd.f32 %v1001, %v1157
        %v1159 = vpop.f32.mrf.mxu0
        %v1160 = vadd.f32 %v1001, %v1159
        %1161 = vmatmul.bf16.gmra.mxu0 %v873
        %v1162 = vpop.f32.mrf.mxu0
        %v1163 = vadd.f32 %v1001, %v1162
        %v1164 = vpop.f32.mrf.mxu0
        %v1165 = vadd.f32 %v1001, %v1164
        %1166 = vmatmul.bf16.gmra.mxu0 %v874
        %v1167 = vpop.f32.mrf.mxu0
        %v1168 = vadd.f32 %v1001, %v1167
        %v1169 = vpop.f32.mrf.mxu0
        %v1170 = vadd.f32 %v1001, %v1169
        %1171 = vmatmul.bf16.gmra.mxu0 %v875
        %v1172 = vpop.f32.mrf.mxu0
        %v1173 = vadd.f32 %v1001, %v1172
        %v1174 = vpop.f32.mrf.mxu0
        %v1175 = vadd.f32 %v1001, %v1174
        %1176 = vmatmul.bf16.gmra.mxu0 %v876
        %v1177 = vpop.f32.mrf.mxu0
        %v1178 = vadd.f32 %v1001, %v1177
        %v1179 = vpop.f32.mrf.mxu0
        %v1180 = vadd.f32 %v1001, %v1179
        %1181 = vdwg.mxu0
        %1182 = vst [vmem:[%s374] sm:$0xf] %v801
        %1183 = vst [vmem:[%s374 + $0x8] sm:$0xf] %v802
        %1184 = vst [vmem:[%s374 + $0x10] sm:$0xf] %v803
        %1185 = vst [vmem:[%s374 + $0x18] sm:$0xf] %v804
        %1186 = vst [vmem:[%s374 + $0x20] sm:$0xf] %v805
        %1187 = vst [vmem:[%s374 + $0x28] sm:$0xf] %v806
        %1188 = vst [vmem:[%s374 + $0x30] sm:$0xf] %v807
        %1189 = vst [vmem:[%s374 + $0x38] sm:$0xf] %v808
        %1190 = vst [vmem:[%s374 + $0x40] sm:$0xf] %v809
        %1191 = vst [vmem:[%s374 + $0x48] sm:$0xf] %v810
        %1192 = vst [vmem:[%s374 + $0x50] sm:$0xf] %v811
        %1193 = vst [vmem:[%s374 + $0x58] sm:$0xf] %v812
        %1194 = vst [vmem:[%s374 + $0x60] sm:$0xf] %v813
        %1195 = vst [vmem:[%s374 + $0x68] sm:$0xf] %v814
        %1196 = vst [vmem:[%s374 + $0x70] sm:$0xf] %v815
        %1197 = vst [vmem:[%s374 + $0x78] sm:$0xf] %v816
        %v1198 = vpack.c.bf16 %v943, %v943
        %v1199 = vpack.c.bf16 %v945, %v945
        %v1200 = vpack.c.bf16 %v948, %v948
        %v1201 = vpack.c.bf16 %v950, %v950
        %v1202 = vpack.c.bf16 %v953, %v953
        %v1203 = vpack.c.bf16 %v955, %v955
        %v1204 = vpack.c.bf16 %v958, %v958
        %v1205 = vpack.c.bf16 %v960, %v960
        %v1206 = vpack.c.bf16 %v963, %v963
        %v1207 = vpack.c.bf16 %v965, %v965
        %v1208 = vpack.c.bf16 %v968, %v968
        %v1209 = vpack.c.bf16 %v970, %v970
        %v1210 = vpack.c.bf16 %v973, %v973
        %v1211 = vpack.c.bf16 %v975, %v975
        %v1212 = vpack.c.bf16 %v978, %v978
        %v1213 = vpack.c.bf16 %v980, %v980
        %1214 = vst [vmem:[%s374 + $0x4] sm:$0xf] %v1198
        %1215 = vst [vmem:[%s374 + $0xc] sm:$0xf] %v1199
        %1216 = vst [vmem:[%s374 + $0x14] sm:$0xf] %v1200
        %1217 = vst [vmem:[%s374 + $0x1c] sm:$0xf] %v1201
        %1218 = vst [vmem:[%s374 + $0x24] sm:$0xf] %v1202
        %1219 = vst [vmem:[%s374 + $0x2c] sm:$0xf] %v1203
        %1220 = vst [vmem:[%s374 + $0x34] sm:$0xf] %v1204
        %1221 = vst [vmem:[%s374 + $0x3c] sm:$0xf] %v1205
        %1222 = vst [vmem:[%s374 + $0x44] sm:$0xf] %v1206
        %1223 = vst [vmem:[%s374 + $0x4c] sm:$0xf] %v1207
        %1224 = vst [vmem:[%s374 + $0x54] sm:$0xf] %v1208
        %1225 = vst [vmem:[%s374 + $0x5c] sm:$0xf] %v1209
        %1226 = vst [vmem:[%s374 + $0x64] sm:$0xf] %v1210
        %1227 = vst [vmem:[%s374 + $0x6c] sm:$0xf] %v1211
        %1228 = vst [vmem:[%s374 + $0x74] sm:$0xf] %v1212
        %1229 = vst [vmem:[%s374 + $0x7c] sm:$0xf] %v1213
        %v1230 = vpack.c.bf16 %v1143, %v1094
        %v1231 = vpack.c.bf16 %v1145, %v1096
        %v1232 = vpack.c.bf16 %v1148, %v1099
        %v1233 = vpack.c.bf16 %v1150, %v1101
        %v1234 = vpack.c.bf16 %v1153, %v1104
        %v1235 = vpack.c.bf16 %v1155, %v1106
        %v1236 = vpack.c.bf16 %v1158, %v1109
        %v1237 = vpack.c.bf16 %v1160, %v1111
        %v1238 = vpack.c.bf16 %v1163, %v1114
        %v1239 = vpack.c.bf16 %v1165, %v1116
        %v1240 = vpack.c.bf16 %v1168, %v1119
        %v1241 = vpack.c.bf16 %v1170, %v1121
        %v1242 = vpack.c.bf16 %v1173, %v1124
        %v1243 = vpack.c.bf16 %v1175, %v1126
        %v1244 = vpack.c.bf16 %v1178, %v1129
        %v1245 = vpack.c.bf16 %v1180, %v1131
        %1246 = vst [vmem:[%s381] sm:$0xff] %v1230
        %1247 = vst [vmem:[%s381 + $0x8] sm:$0xff] %v1231
        %1248 = vst [vmem:[%s381 + $0x10] sm:$0xff] %v1232
        %1249 = vst [vmem:[%s381 + $0x18] sm:$0xff] %v1233
        %1250 = vst [vmem:[%s381 + $0x20] sm:$0xff] %v1234
        %1251 = vst [vmem:[%s381 + $0x28] sm:$0xff] %v1235
        %1252 = vst [vmem:[%s381 + $0x30] sm:$0xff] %v1236
        %1253 = vst [vmem:[%s381 + $0x38] sm:$0xff] %v1237
        %1254 = vst [vmem:[%s381 + $0x40] sm:$0xff] %v1238
        %1255 = vst [vmem:[%s381 + $0x48] sm:$0xff] %v1239
        %1256 = vst [vmem:[%s381 + $0x50] sm:$0xff] %v1240
        %1257 = vst [vmem:[%s381 + $0x58] sm:$0xff] %v1241
        %1258 = vst [vmem:[%s381 + $0x60] sm:$0xff] %v1242
        %1259 = vst [vmem:[%s381 + $0x68] sm:$0xff] %v1243
        %1260 = vst [vmem:[%s381 + $0x70] sm:$0xff] %v1244
        %1261 = vst [vmem:[%s381 + $0x78] sm:$0xff] %v1245
        %s1262 = sand.u32 %s229, 1
        %s1263 = scalar_lea.sflag [#allocation3], %s1262
        %s1264 = sand.u32 %s229, 1
        %s1265 = smul.addr %s1264, 128
        %s1266 = scalar_lea.vmem [#allocation2], %s1265
        %s1267 = sand.u32 %s257, 1
        %s1268 = scalar_lea.sflag [#allocation5], %s1267
        %s1269 = sand.u32 %s257, 1
        %s1270 = smul.addr %s1269, 128
        %s1271 = scalar_lea.vmem [#allocation4], %s1270
        // Predicated region
        $region53: #{tpu_custom_call.1} parent=51 // pred_check
          %p1272 = pneg %p239
        $region54: #{tpu_custom_call.1} parent=51 // pred_check_branch
          %1274 = sbr.rel (%p1272) target = $region56
        $region55: #{tpu_custom_call.1} parent=51 // pred_region
          %s1275 = smul.u32 16, %s32
          %1277 = vsyncadd %s1263, 0
          %s1278 = smul.addr %s1275, 2
          %s1279 = smul.addr %s31, 32
          %s1280 = sadd.s32 %s1278, %s1279
          %s1281 = smul.addr %s1280, 4
          %s1282 = scalar_lea.hbm %s8, %s1281
          %s1283 = sshll.u32 %s1266, 4
          %s1284 = int_to_ptr.vmem [resolvable:$true] %s1283
          %s1285 = sshll.u32 %s1282, 4
          %s1286 = int_to_ptr.hbm [resolvable:$true] %s1285
          %1291 = dma.vmem_to_hbm [thread:$0]  %s1284, 2048, %s1286, %s1263, 128, 128, 8
        $region56: #{tpu_custom_call.1} parent=51 // pred_fallthru
          _
        // Predicated region
        $region57: #{tpu_custom_call.1} parent=51 // pred_check
          %p1292 = pneg %p267
        $region58: #{tpu_custom_call.1} parent=51 // pred_check_branch
          %1294 = sbr.rel (%p1292) target = $region60
        $region59: #{tpu_custom_call.1} parent=51 // pred_region
          %s1295 = smul.u32 16, %s32
          %1297 = vsyncadd %s1268, 0
          %s1298 = smul.addr %s1295, 2
          %s1299 = smul.addr %s31, 32
          %s1300 = sadd.s32 %s1298, %s1299
          %s1301 = smul.addr %s1300, 4
          %s1302 = scalar_lea.hbm %s9, %s1301
          %s1303 = sshll.u32 %s1271, 4
          %s1304 = int_to_ptr.vmem [resolvable:$true] %s1303
          %s1305 = sshll.u32 %s1302, 4
          %s1306 = int_to_ptr.hbm [resolvable:$true] %s1305
          %1311 = dma.vmem_to_hbm [thread:$0]  %s1304, 2048, %s1306, %s1268, 128, 128, 8
        $region60: #{tpu_custom_call.1} parent=51 // pred_fallthru
          _
      $region52: #{tpu_custom_call.1} parent=5 // pred_fallthru
        _
      %p1312 = scmp.le.s32.totalorder 2, %s22
      // Predicated region
      $region61: #{tpu_custom_call.1} parent=5 // pred_check
        %p1313 = pneg %p1312
      $region62: #{tpu_custom_call.1} parent=5 // pred_check_branch
        %1315 = sbr.rel (%p1313) target = $region64
      $region63: #{tpu_custom_call.1} parent=5 // pred_region
        %s1316 = ssub.s32 %s22, 2
        // Predicated region
        $region65: #{tpu_custom_call.1} parent=63 // pred_check
          %p1317 = pneg %p245
        $region66: #{tpu_custom_call.1} parent=63 // pred_check_branch
          %1319 = sbr.rel (%p1317) target = $region68
        $region67: #{tpu_custom_call.1} parent=63 // pred_region
          %s1320 = sand.u32 %s230, 1
          %s1321 = scalar_lea.sflag [#allocation3], %s1320
          %s1322 = sand.u32 %s230, 1
          %s1323 = smul.addr %s1322, 128
          %s1324 = scalar_lea.vmem [#allocation2], %s1323
          %1326 = dma.done %s1321, 2048
        $region68: #{tpu_custom_call.1} parent=63 // pred_fallthru
          _
        // Predicated region
        $region69: #{tpu_custom_call.1} parent=63 // pred_check
          %p1327 = pneg %p273
        $region70: #{tpu_custom_call.1} parent=63 // pred_check_branch
          %1329 = sbr.rel (%p1327) target = $region72
        $region71: #{tpu_custom_call.1} parent=63 // pred_region
          %s1330 = sand.u32 %s258, 1
          %s1331 = scalar_lea.sflag [#allocation5], %s1330
          %s1332 = sand.u32 %s258, 1
          %s1333 = smul.addr %s1332, 128
          %s1334 = scalar_lea.vmem [#allocation4], %s1333
          %1336 = dma.done %s1331, 2048
        $region72: #{tpu_custom_call.1} parent=63 // pred_fallthru
          _
      $region64: #{tpu_custom_call.1} parent=5 // pred_fallthru
        _
    $region6: #{tpu_custom_call.1} parent=1 // loop_footer
      %s26 = sadd.s32 1, %s22
    $region7: #{tpu_custom_call.1} parent=1 // loop_footer_branch
      %21 = sbr.rel target = $region3
    $region8: #{tpu_custom_call.1} parent=1 // loop_exit
      _
    %1337 = vsyncpa [#allocation3], 1
    %s1338 = scalar_lea.sflag [#allocation3], 1
    %1339 = vsyncpa %s1338, 1
    %1340 = vsyncpa [#allocation5], 1
    %s1341 = scalar_lea.sflag [#allocation5], 1
    %1342 = vsyncpa %s1341, 1

</llo_original>
